<compile_context>
chip_gen: v5e
topology: v5e:2x2
jax: 0.10.0
libtpu: 0.0.40
codegen_flags: <defaults>
</compile_context>

<pallas_src>
import jax
import jax.numpy as jnp
import numpy as np
from jax import lax
from jax.experimental import pallas as pl
from jax.experimental.pallas import tpu as pltpu

LANES = 128
SUBLANES = 8
NEG_BIG = -1e30  # acts as -inf for padded vocab lanes without producing inf/nan


def _pad_to(n, m):
    return ((n + m - 1) // m) * m


# ------------------------ fused embedding + LSTM stack + MLP head ------------------------
def _make_fused_kernel(num_layers, T, Bpad, H, V):
    TBp = T * Bpad

    def kernel(tok_ref, emb_ref, *refs):
        layer_refs = refs[:3 * num_layers]
        (w1_ref, b1_ref, w2_ref, b2_ref,
         out_ref, xproj_scr, act_a, act_b) = refs[3 * num_layers:]

        # ---- fused embedding lookup: one-hot (TBp,V) @ emb(V,E) on the MXU ----
        tok = tok_ref[...]                                           # (TBp, 1) int32
        iota = lax.broadcasted_iota(jnp.int32, (TBp, V), 1)
        onehot = (tok == iota).astype(emb_ref.dtype)                 # bf16 0/1
        x0 = jnp.dot(onehot, emb_ref[...],
                     preferred_element_type=jnp.float32)             # (TBp, E) f32

        act_bufs = [act_a, act_b]

        for l in range(num_layers):
            wih_ref = layer_refs[3 * l + 0]   # (E_l, 4H) bf16, pre-transposed
            whh_ref = layer_refs[3 * l + 1]   # (H, 4H)   f32,  pre-transposed
            bias_ref = layer_refs[3 * l + 2]  # (1, 4H)   f32,  b_ih + b_hh
            dst_ref = act_bufs[l % 2]

            if l == 0:
                x_in = x0                                            # (TBp, E) f32
            else:
                x_in = act_bufs[(l - 1) % 2][...].reshape(TBp, H)    # prev layer h-seq

            # Hoisted input projection: one big MXU matmul, off the serial T path.
            xproj = (jnp.dot(x_in.astype(wih_ref.dtype), wih_ref[...],
                             preferred_element_type=jnp.float32)
                     + bias_ref[...])                                # (TBp, 4H) f32
            xproj_scr[...] = xproj.reshape(T, Bpad, 4 * H)

            whh = whh_ref[...]                                       # (H, 4H) f32

            def step(t, carry, whh=whh, dst_ref=dst_ref):
                h, c = carry
                # Per-step work on the critical chain: one (Bpad,H)x(H,4H) matmul +
                # gate elementwise. xproj_scr[t] is a single tile-aligned (8,128) load.
                gates = xproj_scr[t] + jnp.dot(h, whh,
                                               preferred_element_type=jnp.float32)
                # full-vreg EUP passes, then static lane slices (PyTorch i,f,g,o order)
                sig = jax.nn.sigmoid(gates)
                th = jnp.tanh(gates)
                i_g = sig[:, 0 * H:1 * H]
                f_g = sig[:, 1 * H:2 * H]
                g_g = th[:, 2 * H:3 * H]
                o_g = sig[:, 3 * H:4 * H]
                c_new = f_g * c + i_g * g_g
                h_new = o_g * jnp.tanh(c_new)
                dst_ref[t] = h_new                                   # tile-aligned store
                return h_new, c_new

            zeros = jnp.zeros((Bpad, H), jnp.float32)
            # small fixed T -> fully unrolled so the scheduler sees across steps
            lax.fori_loop(0, T, step, (zeros, zeros), unroll=True)
            # TODO(synk): nn.LSTM inter-layer dropout is training-only (eval no-op here).

        # MLP head + log_softmax on the full (TBp, H) slab; output is lane-dense (Vp=128).
        feats = act_bufs[(num_layers - 1) % 2][...].reshape(TBp, H)
        h1 = (jnp.dot(feats.astype(w1_ref.dtype), w1_ref[...],
                      preferred_element_type=jnp.float32) + b1_ref[...])
        h1 = jnp.maximum(h1, 0.0)
        logits = (jnp.dot(h1.astype(w2_ref.dtype), w2_ref[...],
                          preferred_element_type=jnp.float32)
                  + b2_ref[...])                                     # pad lanes ~ -1e30
        m = jnp.max(logits, axis=-1, keepdims=True)
        lse = m + jnp.log(jnp.sum(jnp.exp(logits - m), axis=-1, keepdims=True))
        out_ref[...] = (logits - lse).astype(out_ref.dtype)

    return kernel


def fused_lstm_mlp(tok_flat, emb, lstm_layers, w1_t, b1_row, w2_t_pad, b2_row_pad,
                   *, T, Bpad):
    """tok_flat: (T*Bpad, 1) int32, time-major, batch padded to the sublane tile."""
    TBp = T * Bpad
    H = lstm_layers[0]["w_hh_t"].shape[0]
    V, E = emb.shape
    h2 = w1_t.shape[1]
    Vp = w2_t_pad.shape[1]
    L = len(lstm_layers)

    kernel = _make_fused_kernel(L, T, Bpad, H, V)

    args = [tok_flat, emb]
    for layer in lstm_layers:
        args += [layer["w_ih_t"], layer["w_hh_t"], layer["bias"]]
    args += [w1_t, b1_row, w2_t_pad, b2_row_pad]

    # Advisory cost hint so XLA schedules the (tiny) surrounding ops around this call.
    flops = (2 * TBp * V * E                                   # one-hot embedding matmul
             + 2 * TBp * E * 4 * H + 2 * (L - 1) * TBp * H * 4 * H   # hoisted projections
             + L * T * 2 * Bpad * H * 4 * H                    # recurrent matmuls
             + L * T * Bpad * 12 * H                            # gate elementwise
             + 2 * TBp * H * h2 + 2 * TBp * h2 * Vp             # head
             + 6 * TBp * Vp)                                    # log_softmax
    transcend = L * T * Bpad * (4 * H + 4 * H + H) + TBp * Vp + TBp
    bytes_acc = (sum(int(np.prod(a.shape)) * a.dtype.itemsize for a in args)
                 + TBp * Vp * 4)

    vmem_spec = pl.BlockSpec(memory_space=pltpu.MemorySpace.VMEM)
    return pl.pallas_call(
        kernel,
        out_shape=jax.ShapeDtypeStruct((TBp, Vp), jnp.float32),
        in_specs=[vmem_spec] * len(args),
        out_specs=pl.BlockSpec(memory_space=pltpu.MemorySpace.VMEM),
        scratch_shapes=[
            pltpu.VMEM((T, Bpad, 4 * H), jnp.float32),   # hoisted input projection
            pltpu.VMEM((T, Bpad, H), jnp.float32),       # per-layer h-seq (ping)
            pltpu.VMEM((T, Bpad, H), jnp.float32),       # per-layer h-seq (pong)
        ],
        compiler_params=pltpu.CompilerParams(vmem_limit_bytes=32 * 1024 * 1024),
        cost_estimate=pl.CostEstimate(flops=int(flops),
                                      transcendentals=int(transcend),
                                      bytes_accessed=int(bytes_acc)),
    )(*args)


# ----------------------------------- full model -----------------------------------
@jax.jit
def lstm_model_forward(params, tokens, gather_idx):
    """tokens: (B, T) int32 right-padded with 0 (lengths sorted descending);
    gather_idx: (N_valid,) int32 row ids (t*Bpad + b) of valid positions, in PyTorch
    batch-major order (replaces pad_packed + per-sentence slicing)."""
    B, T = tokens.shape
    Bpad = _pad_to(B, SUBLANES)
    vocab = params["embedding"].shape[0]
    # Tiny int32 reshuffle; embedding gather + activation transpose are in-kernel now.
    tok_tm = jnp.transpose(tokens, (1, 0))                            # (T, B)
    tok_tm = jnp.pad(tok_tm, ((0, 0), (0, Bpad - B)))                 # (T, Bpad)
    tok_flat = tok_tm.reshape(T * Bpad, 1).astype(jnp.int32)
    out_pad = fused_lstm_mlp(
        tok_flat, params["embedding"], params["lstm"], params["w1_t"], params["b1"],
        params["w2_t_pad"], params["b2_pad"], T=T, Bpad=Bpad)
    # Padded timesteps / batch lanes never influence valid outputs (recurrence is causal,
    # padded lanes are dropped); one fixed-shape gather, then strip the vocab pad lanes.
    return jnp.take(out_pad, gather_idx, axis=0)[:, :vocab]


# ------------------------------- deterministic params ------------------------------
def init_params(key, embedding_dim, h1_dim, h2_dim, dict_size, num_lstm_layers):
    H = h1_dim
    V = dict_size + 1
    Vp = _pad_to(V, LANES)
    params = {}
    key, k = jax.random.split(key)
    params["embedding"] = jax.random.normal(
        k, (V, embedding_dim), jnp.float32).astype(jnp.bfloat16)

    scale = 1.0 / float(H) ** 0.5
    layers = []
    in_dim = embedding_dim
    for _ in range(num_lstm_layers):
        key, k1, k2, k3, k4 = jax.random.split(key, 5)
        w_ih = jax.random.uniform(k1, (4 * H, in_dim), jnp.float32, -scale, scale)
        w_hh = jax.random.uniform(k2, (4 * H, H), jnp.float32, -scale, scale)
        b_ih = jax.random.uniform(k3, (4 * H,), jnp.float32, -scale, scale)
        b_hh = jax.random.uniform(k4, (4 * H,), jnp.float32, -scale, scale)
        layers.append({
            # stored pre-transposed (gate dim 4H on lanes) with biases pre-combined
            "w_ih_t": jnp.transpose(w_ih).astype(jnp.bfloat16),   # (in_dim, 4H) bf16
            "w_hh_t": jnp.transpose(w_hh),                        # (H, 4H) f32 (serial path)
            "bias": (b_ih + b_hh).reshape(1, 4 * H),              # (1, 4H) f32
        })
        in_dim = H
    params["lstm"] = layers

    key, k1, k2, k3, k4 = jax.random.split(key, 5)
    s1 = 1.0 / float(H) ** 0.5
    w1 = jax.random.uniform(k1, (h2_dim, H), jnp.float32, -s1, s1)
    b1 = jax.random.uniform(k2, (h2_dim,), jnp.float32, -s1, s1)
    s2 = 1.0 / float(h2_dim) ** 0.5
    w2 = jax.random.uniform(k3, (V, h2_dim), jnp.float32, -s2, s2)
    b2 = jax.random.uniform(k4, (V,), jnp.float32, -s2, s2)

    params["w1_t"] = jnp.transpose(w1).astype(jnp.bfloat16)       # (H, h2)
    params["b1"] = b1.reshape(1, h2_dim)
    # pad vocab to a multiple of 128 lanes: zero weight columns + very-negative bias keep
    # the log_softmax over real lanes unchanged and make the output store lane-dense
    w2_t = jnp.transpose(w2)                                      # (h2, V)
    params["w2_t_pad"] = jnp.pad(w2_t, ((0, 0), (0, Vp - V))).astype(jnp.bfloat16)
    params["b2_pad"] = jnp.pad(b2, (0, Vp - V), constant_values=NEG_BIG).reshape(1, Vp)
    return params


if __name__ == "__main__":
    # Model hyperparameters (small, consistent with the module's __init__)
    embedding_dim = 32
    lstm_dim = 32          # unused by the reference module as well
    h1_dim = 32            # LSTM hidden size / Linear h1 input size
    h2_dim = 32
    dropout = 0.0
    dict_size = 63         # vocab = dict_size + 1 = 64
    num_lstm_layers = 2

    key = jax.random.PRNGKey(0)
    params = init_params(key, embedding_dim, h1_dim, h2_dim, dict_size, num_lstm_layers)

    # Batch of 4 variable-length sentences, lengths sorted descending (as
    # pack_padded_sequence with enforce_sorted=True requires), right-padded with 0.
    lengths = [8, 7, 5, 3]
    B, T = len(lengths), lengths[0]
    Bpad = _pad_to(B, SUBLANES)
    key, k = jax.random.split(key)
    tokens = jax.random.randint(k, (B, T), 1, dict_size + 1, dtype=jnp.int32)
    valid = jnp.arange(T)[None, :] < jnp.array(lengths)[:, None]
    tokens = jnp.where(valid, tokens, 0)

    # PyTorch h1_input ordering: for each sentence i, its first lengths[i] timesteps.
    # Row id of (batch b, time t) in the kernel's time-major (T*Bpad) output is t*Bpad + b.
    gather_idx = jnp.asarray(
        np.concatenate([np.arange(lengths[i]) * Bpad + i
                        for i in range(B)]).astype(np.int32))

    out = lstm_model_forward(params, tokens, gather_idx)
    out = jax.block_until_ready(out)

    assert out.shape == (sum(lengths), dict_size + 1), out.shape
    assert bool(jnp.all(jnp.isfinite(out)))
    # rows of log_softmax should sum (in prob space) to ~1
    assert bool(jnp.allclose(jnp.sum(jnp.exp(out), axis=1), 1.0, atol=1e-4))
    print("KERNEL_OK")
</pallas_src>

<mosaic_0001>
module attributes {stable_mosaic.version = 11 : i64} {
  func.func @kernel(%arg0: memref<64x1xi32, #tpu.memory_space<vmem>>, %arg1: memref<64x32xbf16, #tpu.memory_space<vmem>>, %arg2: memref<32x128xbf16, #tpu.memory_space<vmem>>, %arg3: memref<32x128xf32, #tpu.memory_space<vmem>>, %arg4: memref<1x128xf32, #tpu.memory_space<vmem>>, %arg5: memref<32x128xbf16, #tpu.memory_space<vmem>>, %arg6: memref<32x128xf32, #tpu.memory_space<vmem>>, %arg7: memref<1x128xf32, #tpu.memory_space<vmem>>, %arg8: memref<32x32xbf16, #tpu.memory_space<vmem>>, %arg9: memref<1x32xf32, #tpu.memory_space<vmem>>, %arg10: memref<32x128xbf16, #tpu.memory_space<vmem>>, %arg11: memref<1x128xf32, #tpu.memory_space<vmem>>, %arg12: memref<64x128xf32, #tpu.memory_space<vmem>>, %arg13: memref<8x8x128xf32, #tpu.memory_space<vmem>>, %arg14: memref<8x8x32xf32, #tpu.memory_space<vmem>>, %arg15: memref<8x8x32xf32, #tpu.memory_space<vmem>>) attributes {dimension_semantics = [], scalar_prefetch = 0 : i64, scratch_operands = 3 : i64, tpu.core_type = #tpu.core_type<tc>} {
    %c0 = arith.constant 0 : index
    %c0_0 = arith.constant 0 : index
    %0 = vector.load %arg0[%c0, %c0_0] : memref<64x1xi32, #tpu.memory_space<vmem>>, vector<64x1xi32>
    %1 = tpu.iota {dimensions = array<i32: 1>} : vector<64x64xi32>
    %2 = vector.broadcast %0 : vector<64x1xi32> to vector<64x64xi32>
    %3 = arith.cmpi eq, %2, %1 : vector<64x64xi32>
    %4 = arith.extui %3 : vector<64x64xi1> to vector<64x64xi32>
    %5 = arith.sitofp %4 : vector<64x64xi32> to vector<64x64xf32>
    %6 = arith.truncf %5 : vector<64x64xf32> to vector<64x64xbf16>
    %c0_1 = arith.constant 0 : index
    %c0_2 = arith.constant 0 : index
    %7 = vector.load %arg1[%c0_1, %c0_2] : memref<64x32xbf16, #tpu.memory_space<vmem>>, vector<64x32xbf16>
    %cst = arith.constant dense<0.000000e+00> : vector<64x32xf32>
    %8 = tpu.matmul %6, %7, %cst {dimension_numbers = #tpu.dot_dimension_numbers<[1], [0], [0], [1], [0, 0, 1, 1], [], []>} : vector<64x64xbf16>, vector<64x32xbf16>, vector<64x32xf32> -> vector<64x32xf32>
    %9 = arith.truncf %8 : vector<64x32xf32> to vector<64x32xbf16>
    %c0_3 = arith.constant 0 : index
    %c0_4 = arith.constant 0 : index
    %10 = vector.load %arg2[%c0_3, %c0_4] : memref<32x128xbf16, #tpu.memory_space<vmem>>, vector<32x128xbf16>
    %cst_5 = arith.constant dense<0.000000e+00> : vector<64x128xf32>
    %11 = tpu.matmul %9, %10, %cst_5 {dimension_numbers = #tpu.dot_dimension_numbers<[1], [0], [0], [1], [0, 0, 1, 1], [], []>} : vector<64x32xbf16>, vector<32x128xbf16>, vector<64x128xf32> -> vector<64x128xf32>
    %c0_6 = arith.constant 0 : index
    %c0_7 = arith.constant 0 : index
    %12 = vector.load %arg4[%c0_6, %c0_7] : memref<1x128xf32, #tpu.memory_space<vmem>>, vector<1x128xf32>
    %13 = vector.broadcast %12 : vector<1x128xf32> to vector<64x128xf32>
    %14 = arith.addf %11, %13 : vector<64x128xf32>
    %15 = vector.shape_cast %14 : vector<64x128xf32> to vector<8x8x128xf32>
    %c0_8 = arith.constant 0 : index
    %c0_9 = arith.constant 0 : index
    %c0_10 = arith.constant 0 : index
    %16 = vector.load %arg13[%c0_8, %c0_9, %c0_10] : memref<8x8x128xf32, #tpu.memory_space<vmem>>, vector<8x8x128xf32>
    tpu.vector_store %arg13[%c0_8, %c0_9, %c0_10], %15 {strides = array<i32>} : memref<8x8x128xf32, #tpu.memory_space<vmem>>, vector<8x8x128xf32>,
    %c0_11 = arith.constant 0 : index
    %c0_12 = arith.constant 0 : index
    %17 = vector.load %arg3[%c0_11, %c0_12] : memref<32x128xf32, #tpu.memory_space<vmem>>, vector<32x128xf32>
    %cst_13 = arith.constant 0.000000e+00 : f32
    %18 = vector.broadcast %cst_13 : f32 to vector<8x32xf32>
    %c0_i32 = arith.constant 0 : i32
    %19 = arith.index_cast %c0_i32 : i32 to index
    %c0_14 = arith.constant 0 : index
    %c0_15 = arith.constant 0 : index
    %20 = vector.load %arg13[%19, %c0_14, %c0_15] : memref<8x8x128xf32, #tpu.memory_space<vmem>>, vector<1x8x128xf32>
    %21 = vector.shape_cast %20 : vector<1x8x128xf32> to vector<8x128xf32>
    %cst_16 = arith.constant dense<0.000000e+00> : vector<8x128xf32>
    %22 = tpu.matmul %18, %17, %cst_16 {dimension_numbers = #tpu.dot_dimension_numbers<[1], [0], [0], [1], [0, 0, 1, 1], [], []>} : vector<8x32xf32>, vector<32x128xf32>, vector<8x128xf32> -> vector<8x128xf32>
    %23 = arith.addf %21, %22 : vector<8x128xf32>
    %24 = arith.negf %23 : vector<8x128xf32>
    %25 = math.exp %24 : vector<8x128xf32>
    %cst_17 = arith.constant 1.000000e+00 : f32
    %26 = vector.broadcast %cst_17 : f32 to vector<8x128xf32>
    %27 = arith.addf %26, %25 : vector<8x128xf32>
    %28 = arith.divf %26, %27 : vector<8x128xf32>
    %29 = math.tanh %23 : vector<8x128xf32>
    %30 = vector.extract_strided_slice %28 {offsets = [0, 0], sizes = [8, 32], strides = [1, 1]} : vector<8x128xf32> to vector<8x32xf32>
    %31 = vector.extract_strided_slice %28 {offsets = [0, 32], sizes = [8, 32], strides = [1, 1]} : vector<8x128xf32> to vector<8x32xf32>
    %32 = vector.extract_strided_slice %29 {offsets = [0, 64], sizes = [8, 32], strides = [1, 1]} : vector<8x128xf32> to vector<8x32xf32>
    %33 = vector.extract_strided_slice %28 {offsets = [0, 96], sizes = [8, 32], strides = [1, 1]} : vector<8x128xf32> to vector<8x32xf32>
    %34 = arith.mulf %31, %18 : vector<8x32xf32>
    %35 = arith.mulf %30, %32 : vector<8x32xf32>
    %36 = arith.addf %34, %35 : vector<8x32xf32>
    %37 = math.tanh %36 : vector<8x32xf32>
    %38 = arith.mulf %33, %37 : vector<8x32xf32>
    %39 = arith.index_cast %c0_i32 : i32 to index
    %c0_18 = arith.constant 0 : index
    %c0_19 = arith.constant 0 : index
    %40 = vector.load %arg14[%39, %c0_18, %c0_19] : memref<8x8x32xf32, #tpu.memory_space<vmem>>, vector<1x8x32xf32>
    %41 = vector.shape_cast %40 : vector<1x8x32xf32> to vector<8x32xf32>
    %42 = vector.shape_cast %38 : vector<8x32xf32> to vector<1x8x32xf32>
    tpu.vector_store %arg14[%39, %c0_18, %c0_19], %42 {strides = array<i32>} : memref<8x8x32xf32, #tpu.memory_space<vmem>>, vector<1x8x32xf32>,
    %c1_i32 = arith.constant 1 : i32
    %43 = arith.index_cast %c1_i32 : i32 to index
    %c0_20 = arith.constant 0 : index
    %c0_21 = arith.constant 0 : index
    %44 = vector.load %arg13[%43, %c0_20, %c0_21] : memref<8x8x128xf32, #tpu.memory_space<vmem>>, vector<1x8x128xf32>
    %45 = vector.shape_cast %44 : vector<1x8x128xf32> to vector<8x128xf32>
    %cst_22 = arith.constant dense<0.000000e+00> : vector<8x128xf32>
    %46 = tpu.matmul %38, %17, %cst_22 {dimension_numbers = #tpu.dot_dimension_numbers<[1], [0], [0], [1], [0, 0, 1, 1], [], []>} : vector<8x32xf32>, vector<32x128xf32>, vector<8x128xf32> -> vector<8x128xf32>
    %47 = arith.addf %45, %46 : vector<8x128xf32>
    %48 = arith.negf %47 : vector<8x128xf32>
    %49 = math.exp %48 : vector<8x128xf32>
    %cst_23 = arith.constant 1.000000e+00 : f32
    %50 = vector.broadcast %cst_23 : f32 to vector<8x128xf32>
    %51 = arith.addf %50, %49 : vector<8x128xf32>
    %52 = arith.divf %50, %51 : vector<8x128xf32>
    %53 = math.tanh %47 : vector<8x128xf32>
    %54 = vector.extract_strided_slice %52 {offsets = [0, 0], sizes = [8, 32], strides = [1, 1]} : vector<8x128xf32> to vector<8x32xf32>
    %55 = vector.extract_strided_slice %52 {offsets = [0, 32], sizes = [8, 32], strides = [1, 1]} : vector<8x128xf32> to vector<8x32xf32>
    %56 = vector.extract_strided_slice %53 {offsets = [0, 64], sizes = [8, 32], strides = [1, 1]} : vector<8x128xf32> to vector<8x32xf32>
    %57 = vector.extract_strided_slice %52 {offsets = [0, 96], sizes = [8, 32], strides = [1, 1]} : vector<8x128xf32> to vector<8x32xf32>
    %58 = arith.mulf %55, %36 : vector<8x32xf32>
    %59 = arith.mulf %54, %56 : vector<8x32xf32>
    %60 = arith.addf %58, %59 : vector<8x32xf32>
    %61 = math.tanh %60 : vector<8x32xf32>
    %62 = arith.mulf %57, %61 : vector<8x32xf32>
    %63 = arith.index_cast %c1_i32 : i32 to index
    %c0_24 = arith.constant 0 : index
    %c0_25 = arith.constant 0 : index
    %64 = vector.load %arg14[%63, %c0_24, %c0_25] : memref<8x8x32xf32, #tpu.memory_space<vmem>>, vector<1x8x32xf32>
    %65 = vector.shape_cast %64 : vector<1x8x32xf32> to vector<8x32xf32>
    %66 = vector.shape_cast %62 : vector<8x32xf32> to vector<1x8x32xf32>
    tpu.vector_store %arg14[%63, %c0_24, %c0_25], %66 {strides = array<i32>} : memref<8x8x32xf32, #tpu.memory_space<vmem>>, vector<1x8x32xf32>,
    %c2_i32 = arith.constant 2 : i32
    %67 = arith.index_cast %c2_i32 : i32 to index
    %c0_26 = arith.constant 0 : index
    %c0_27 = arith.constant 0 : index
    %68 = vector.load %arg13[%67, %c0_26, %c0_27] : memref<8x8x128xf32, #tpu.memory_space<vmem>>, vector<1x8x128xf32>
    %69 = vector.shape_cast %68 : vector<1x8x128xf32> to vector<8x128xf32>
    %cst_28 = arith.constant dense<0.000000e+00> : vector<8x128xf32>
    %70 = tpu.matmul %62, %17, %cst_28 {dimension_numbers = #tpu.dot_dimension_numbers<[1], [0], [0], [1], [0, 0, 1, 1], [], []>} : vector<8x32xf32>, vector<32x128xf32>, vector<8x128xf32> -> vector<8x128xf32>
    %71 = arith.addf %69, %70 : vector<8x128xf32>
    %72 = arith.negf %71 : vector<8x128xf32>
    %73 = math.exp %72 : vector<8x128xf32>
    %cst_29 = arith.constant 1.000000e+00 : f32
    %74 = vector.broadcast %cst_29 : f32 to vector<8x128xf32>
    %75 = arith.addf %74, %73 : vector<8x128xf32>
    %76 = arith.divf %74, %75 : vector<8x128xf32>
    %77 = math.tanh %71 : vector<8x128xf32>
    %78 = vector.extract_strided_slice %76 {offsets = [0, 0], sizes = [8, 32], strides = [1, 1]} : vector<8x128xf32> to vector<8x32xf32>
    %79 = vector.extract_strided_slice %76 {offsets = [0, 32], sizes = [8, 32], strides = [1, 1]} : vector<8x128xf32> to vector<8x32xf32>
    %80 = vector.extract_strided_slice %77 {offsets = [0, 64], sizes = [8, 32], strides = [1, 1]} : vector<8x128xf32> to vector<8x32xf32>
    %81 = vector.extract_strided_slice %76 {offsets = [0, 96], sizes = [8, 32], strides = [1, 1]} : vector<8x128xf32> to vector<8x32xf32>
    %82 = arith.mulf %79, %60 : vector<8x32xf32>
    %83 = arith.mulf %78, %80 : vector<8x32xf32>
    %84 = arith.addf %82, %83 : vector<8x32xf32>
    %85 = math.tanh %84 : vector<8x32xf32>
    %86 = arith.mulf %81, %85 : vector<8x32xf32>
    %87 = arith.index_cast %c2_i32 : i32 to index
    %c0_30 = arith.constant 0 : index
    %c0_31 = arith.constant 0 : index
    %88 = vector.load %arg14[%87, %c0_30, %c0_31] : memref<8x8x32xf32, #tpu.memory_space<vmem>>, vector<1x8x32xf32>
    %89 = vector.shape_cast %88 : vector<1x8x32xf32> to vector<8x32xf32>
    %90 = vector.shape_cast %86 : vector<8x32xf32> to vector<1x8x32xf32>
    tpu.vector_store %arg14[%87, %c0_30, %c0_31], %90 {strides = array<i32>} : memref<8x8x32xf32, #tpu.memory_space<vmem>>, vector<1x8x32xf32>,
    %c3_i32 = arith.constant 3 : i32
    %91 = arith.index_cast %c3_i32 : i32 to index
    %c0_32 = arith.constant 0 : index
    %c0_33 = arith.constant 0 : index
    %92 = vector.load %arg13[%91, %c0_32, %c0_33] : memref<8x8x128xf32, #tpu.memory_space<vmem>>, vector<1x8x128xf32>
    %93 = vector.shape_cast %92 : vector<1x8x128xf32> to vector<8x128xf32>
    %cst_34 = arith.constant dense<0.000000e+00> : vector<8x128xf32>
    %94 = tpu.matmul %86, %17, %cst_34 {dimension_numbers = #tpu.dot_dimension_numbers<[1], [0], [0], [1], [0, 0, 1, 1], [], []>} : vector<8x32xf32>, vector<32x128xf32>, vector<8x128xf32> -> vector<8x128xf32>
    %95 = arith.addf %93, %94 : vector<8x128xf32>
    %96 = arith.negf %95 : vector<8x128xf32>
    %97 = math.exp %96 : vector<8x128xf32>
    %cst_35 = arith.constant 1.000000e+00 : f32
    %98 = vector.broadcast %cst_35 : f32 to vector<8x128xf32>
    %99 = arith.addf %98, %97 : vector<8x128xf32>
    %100 = arith.divf %98, %99 : vector<8x128xf32>
    %101 = math.tanh %95 : vector<8x128xf32>
    %102 = vector.extract_strided_slice %100 {offsets = [0, 0], sizes = [8, 32], strides = [1, 1]} : vector<8x128xf32> to vector<8x32xf32>
    %103 = vector.extract_strided_slice %100 {offsets = [0, 32], sizes = [8, 32], strides = [1, 1]} : vector<8x128xf32> to vector<8x32xf32>
    %104 = vector.extract_strided_slice %101 {offsets = [0, 64], sizes = [8, 32], strides = [1, 1]} : vector<8x128xf32> to vector<8x32xf32>
    %105 = vector.extract_strided_slice %100 {offsets = [0, 96], sizes = [8, 32], strides = [1, 1]} : vector<8x128xf32> to vector<8x32xf32>
    %106 = arith.mulf %103, %84 : vector<8x32xf32>
    %107 = arith.mulf %102, %104 : vector<8x32xf32>
    %108 = arith.addf %106, %107 : vector<8x32xf32>
    %109 = math.tanh %108 : vector<8x32xf32>
    %110 = arith.mulf %105, %109 : vector<8x32xf32>
    %111 = arith.index_cast %c3_i32 : i32 to index
    %c0_36 = arith.constant 0 : index
    %c0_37 = arith.constant 0 : index
    %112 = vector.load %arg14[%111, %c0_36, %c0_37] : memref<8x8x32xf32, #tpu.memory_space<vmem>>, vector<1x8x32xf32>
    %113 = vector.shape_cast %112 : vector<1x8x32xf32> to vector<8x32xf32>
    %114 = vector.shape_cast %110 : vector<8x32xf32> to vector<1x8x32xf32>
    tpu.vector_store %arg14[%111, %c0_36, %c0_37], %114 {strides = array<i32>} : memref<8x8x32xf32, #tpu.memory_space<vmem>>, vector<1x8x32xf32>,
    %c4_i32 = arith.constant 4 : i32
    %115 = arith.index_cast %c4_i32 : i32 to index
    %c0_38 = arith.constant 0 : index
    %c0_39 = arith.constant 0 : index
    %116 = vector.load %arg13[%115, %c0_38, %c0_39] : memref<8x8x128xf32, #tpu.memory_space<vmem>>, vector<1x8x128xf32>
    %117 = vector.shape_cast %116 : vector<1x8x128xf32> to vector<8x128xf32>
    %cst_40 = arith.constant dense<0.000000e+00> : vector<8x128xf32>
    %118 = tpu.matmul %110, %17, %cst_40 {dimension_numbers = #tpu.dot_dimension_numbers<[1], [0], [0], [1], [0, 0, 1, 1], [], []>} : vector<8x32xf32>, vector<32x128xf32>, vector<8x128xf32> -> vector<8x128xf32>
    %119 = arith.addf %117, %118 : vector<8x128xf32>
    %120 = arith.negf %119 : vector<8x128xf32>
    %121 = math.exp %120 : vector<8x128xf32>
    %cst_41 = arith.constant 1.000000e+00 : f32
    %122 = vector.broadcast %cst_41 : f32 to vector<8x128xf32>
    %123 = arith.addf %122, %121 : vector<8x128xf32>
    %124 = arith.divf %122, %123 : vector<8x128xf32>
    %125 = math.tanh %119 : vector<8x128xf32>
    %126 = vector.extract_strided_slice %124 {offsets = [0, 0], sizes = [8, 32], strides = [1, 1]} : vector<8x128xf32> to vector<8x32xf32>
    %127 = vector.extract_strided_slice %124 {offsets = [0, 32], sizes = [8, 32], strides = [1, 1]} : vector<8x128xf32> to vector<8x32xf32>
    %128 = vector.extract_strided_slice %125 {offsets = [0, 64], sizes = [8, 32], strides = [1, 1]} : vector<8x128xf32> to vector<8x32xf32>
    %129 = vector.extract_strided_slice %124 {offsets = [0, 96], sizes = [8, 32], strides = [1, 1]} : vector<8x128xf32> to vector<8x32xf32>
    %130 = arith.mulf %127, %108 : vector<8x32xf32>
    %131 = arith.mulf %126, %128 : vector<8x32xf32>
    %132 = arith.addf %130, %131 : vector<8x32xf32>
    %133 = math.tanh %132 : vector<8x32xf32>
    %134 = arith.mulf %129, %133 : vector<8x32xf32>
    %135 = arith.index_cast %c4_i32 : i32 to index
    %c0_42 = arith.constant 0 : index
    %c0_43 = arith.constant 0 : index
    %136 = vector.load %arg14[%135, %c0_42, %c0_43] : memref<8x8x32xf32, #tpu.memory_space<vmem>>, vector<1x8x32xf32>
    %137 = vector.shape_cast %136 : vector<1x8x32xf32> to vector<8x32xf32>
    %138 = vector.shape_cast %134 : vector<8x32xf32> to vector<1x8x32xf32>
    tpu.vector_store %arg14[%135, %c0_42, %c0_43], %138 {strides = array<i32>} : memref<8x8x32xf32, #tpu.memory_space<vmem>>, vector<1x8x32xf32>,
    %c5_i32 = arith.constant 5 : i32
    %139 = arith.index_cast %c5_i32 : i32 to index
    %c0_44 = arith.constant 0 : index
    %c0_45 = arith.constant 0 : index
    %140 = vector.load %arg13[%139, %c0_44, %c0_45] : memref<8x8x128xf32, #tpu.memory_space<vmem>>, vector<1x8x128xf32>
    %141 = vector.shape_cast %140 : vector<1x8x128xf32> to vector<8x128xf32>
    %cst_46 = arith.constant dense<0.000000e+00> : vector<8x128xf32>
    %142 = tpu.matmul %134, %17, %cst_46 {dimension_numbers = #tpu.dot_dimension_numbers<[1], [0], [0], [1], [0, 0, 1, 1], [], []>} : vector<8x32xf32>, vector<32x128xf32>, vector<8x128xf32> -> vector<8x128xf32>
    %143 = arith.addf %141, %142 : vector<8x128xf32>
    %144 = arith.negf %143 : vector<8x128xf32>
    %145 = math.exp %144 : vector<8x128xf32>
    %cst_47 = arith.constant 1.000000e+00 : f32
    %146 = vector.broadcast %cst_47 : f32 to vector<8x128xf32>
    %147 = arith.addf %146, %145 : vector<8x128xf32>
    %148 = arith.divf %146, %147 : vector<8x128xf32>
    %149 = math.tanh %143 : vector<8x128xf32>
    %150 = vector.extract_strided_slice %148 {offsets = [0, 0], sizes = [8, 32], strides = [1, 1]} : vector<8x128xf32> to vector<8x32xf32>
    %151 = vector.extract_strided_slice %148 {offsets = [0, 32], sizes = [8, 32], strides = [1, 1]} : vector<8x128xf32> to vector<8x32xf32>
    %152 = vector.extract_strided_slice %149 {offsets = [0, 64], sizes = [8, 32], strides = [1, 1]} : vector<8x128xf32> to vector<8x32xf32>
    %153 = vector.extract_strided_slice %148 {offsets = [0, 96], sizes = [8, 32], strides = [1, 1]} : vector<8x128xf32> to vector<8x32xf32>
    %154 = arith.mulf %151, %132 : vector<8x32xf32>
    %155 = arith.mulf %150, %152 : vector<8x32xf32>
    %156 = arith.addf %154, %155 : vector<8x32xf32>
    %157 = math.tanh %156 : vector<8x32xf32>
    %158 = arith.mulf %153, %157 : vector<8x32xf32>
    %159 = arith.index_cast %c5_i32 : i32 to index
    %c0_48 = arith.constant 0 : index
    %c0_49 = arith.constant 0 : index
    %160 = vector.load %arg14[%159, %c0_48, %c0_49] : memref<8x8x32xf32, #tpu.memory_space<vmem>>, vector<1x8x32xf32>
    %161 = vector.shape_cast %160 : vector<1x8x32xf32> to vector<8x32xf32>
    %162 = vector.shape_cast %158 : vector<8x32xf32> to vector<1x8x32xf32>
    tpu.vector_store %arg14[%159, %c0_48, %c0_49], %162 {strides = array<i32>} : memref<8x8x32xf32, #tpu.memory_space<vmem>>, vector<1x8x32xf32>,
    %c6_i32 = arith.constant 6 : i32
    %163 = arith.index_cast %c6_i32 : i32 to index
    %c0_50 = arith.constant 0 : index
    %c0_51 = arith.constant 0 : index
    %164 = vector.load %arg13[%163, %c0_50, %c0_51] : memref<8x8x128xf32, #tpu.memory_space<vmem>>, vector<1x8x128xf32>
    %165 = vector.shape_cast %164 : vector<1x8x128xf32> to vector<8x128xf32>
    %cst_52 = arith.constant dense<0.000000e+00> : vector<8x128xf32>
    %166 = tpu.matmul %158, %17, %cst_52 {dimension_numbers = #tpu.dot_dimension_numbers<[1], [0], [0], [1], [0, 0, 1, 1], [], []>} : vector<8x32xf32>, vector<32x128xf32>, vector<8x128xf32> -> vector<8x128xf32>
    %167 = arith.addf %165, %166 : vector<8x128xf32>
    %168 = arith.negf %167 : vector<8x128xf32>
    %169 = math.exp %168 : vector<8x128xf32>
    %cst_53 = arith.constant 1.000000e+00 : f32
    %170 = vector.broadcast %cst_53 : f32 to vector<8x128xf32>
    %171 = arith.addf %170, %169 : vector<8x128xf32>
    %172 = arith.divf %170, %171 : vector<8x128xf32>
    %173 = math.tanh %167 : vector<8x128xf32>
    %174 = vector.extract_strided_slice %172 {offsets = [0, 0], sizes = [8, 32], strides = [1, 1]} : vector<8x128xf32> to vector<8x32xf32>
    %175 = vector.extract_strided_slice %172 {offsets = [0, 32], sizes = [8, 32], strides = [1, 1]} : vector<8x128xf32> to vector<8x32xf32>
    %176 = vector.extract_strided_slice %173 {offsets = [0, 64], sizes = [8, 32], strides = [1, 1]} : vector<8x128xf32> to vector<8x32xf32>
    %177 = vector.extract_strided_slice %172 {offsets = [0, 96], sizes = [8, 32], strides = [1, 1]} : vector<8x128xf32> to vector<8x32xf32>
    %178 = arith.mulf %175, %156 : vector<8x32xf32>
    %179 = arith.mulf %174, %176 : vector<8x32xf32>
    %180 = arith.addf %178, %179 : vector<8x32xf32>
    %181 = math.tanh %180 : vector<8x32xf32>
    %182 = arith.mulf %177, %181 : vector<8x32xf32>
    %183 = arith.index_cast %c6_i32 : i32 to index
    %c0_54 = arith.constant 0 : index
    %c0_55 = arith.constant 0 : index
    %184 = vector.load %arg14[%183, %c0_54, %c0_55] : memref<8x8x32xf32, #tpu.memory_space<vmem>>, vector<1x8x32xf32>
    %185 = vector.shape_cast %184 : vector<1x8x32xf32> to vector<8x32xf32>
    %186 = vector.shape_cast %182 : vector<8x32xf32> to vector<1x8x32xf32>
    tpu.vector_store %arg14[%183, %c0_54, %c0_55], %186 {strides = array<i32>} : memref<8x8x32xf32, #tpu.memory_space<vmem>>, vector<1x8x32xf32>,
    %c7_i32 = arith.constant 7 : i32
    %187 = arith.index_cast %c7_i32 : i32 to index
    %c0_56 = arith.constant 0 : index
    %c0_57 = arith.constant 0 : index
    %188 = vector.load %arg13[%187, %c0_56, %c0_57] : memref<8x8x128xf32, #tpu.memory_space<vmem>>, vector<1x8x128xf32>
    %189 = vector.shape_cast %188 : vector<1x8x128xf32> to vector<8x128xf32>
    %cst_58 = arith.constant dense<0.000000e+00> : vector<8x128xf32>
    %190 = tpu.matmul %182, %17, %cst_58 {dimension_numbers = #tpu.dot_dimension_numbers<[1], [0], [0], [1], [0, 0, 1, 1], [], []>} : vector<8x32xf32>, vector<32x128xf32>, vector<8x128xf32> -> vector<8x128xf32>
    %191 = arith.addf %189, %190 : vector<8x128xf32>
    %192 = arith.negf %191 : vector<8x128xf32>
    %193 = math.exp %192 : vector<8x128xf32>
    %cst_59 = arith.constant 1.000000e+00 : f32
    %194 = vector.broadcast %cst_59 : f32 to vector<8x128xf32>
    %195 = arith.addf %194, %193 : vector<8x128xf32>
    %196 = arith.divf %194, %195 : vector<8x128xf32>
    %197 = math.tanh %191 : vector<8x128xf32>
    %198 = vector.extract_strided_slice %196 {offsets = [0, 0], sizes = [8, 32], strides = [1, 1]} : vector<8x128xf32> to vector<8x32xf32>
    %199 = vector.extract_strided_slice %196 {offsets = [0, 32], sizes = [8, 32], strides = [1, 1]} : vector<8x128xf32> to vector<8x32xf32>
    %200 = vector.extract_strided_slice %197 {offsets = [0, 64], sizes = [8, 32], strides = [1, 1]} : vector<8x128xf32> to vector<8x32xf32>
    %201 = vector.extract_strided_slice %196 {offsets = [0, 96], sizes = [8, 32], strides = [1, 1]} : vector<8x128xf32> to vector<8x32xf32>
    %202 = arith.mulf %199, %180 : vector<8x32xf32>
    %203 = arith.mulf %198, %200 : vector<8x32xf32>
    %204 = arith.addf %202, %203 : vector<8x32xf32>
    %205 = math.tanh %204 : vector<8x32xf32>
    %206 = arith.mulf %201, %205 : vector<8x32xf32>
    %207 = arith.index_cast %c7_i32 : i32 to index
    %c0_60 = arith.constant 0 : index
    %c0_61 = arith.constant 0 : index
    %208 = vector.load %arg14[%207, %c0_60, %c0_61] : memref<8x8x32xf32, #tpu.memory_space<vmem>>, vector<1x8x32xf32>
    %209 = vector.shape_cast %208 : vector<1x8x32xf32> to vector<8x32xf32>
    %210 = vector.shape_cast %206 : vector<8x32xf32> to vector<1x8x32xf32>
    tpu.vector_store %arg14[%207, %c0_60, %c0_61], %210 {strides = array<i32>} : memref<8x8x32xf32, #tpu.memory_space<vmem>>, vector<1x8x32xf32>,
    %c8_i32 = arith.constant 8 : i32
    %c0_62 = arith.constant 0 : index
    %c0_63 = arith.constant 0 : index
    %c0_64 = arith.constant 0 : index
    %211 = vector.load %arg14[%c0_62, %c0_63, %c0_64] : memref<8x8x32xf32, #tpu.memory_space<vmem>>, vector<8x8x32xf32>
    %212 = vector.shape_cast %211 : vector<8x8x32xf32> to vector<64x32xf32>
    %213 = arith.truncf %212 : vector<64x32xf32> to vector<64x32xbf16>
    %c0_65 = arith.constant 0 : index
    %c0_66 = arith.constant 0 : index
    %214 = vector.load %arg5[%c0_65, %c0_66] : memref<32x128xbf16, #tpu.memory_space<vmem>>, vector<32x128xbf16>
    %cst_67 = arith.constant dense<0.000000e+00> : vector<64x128xf32>
    %215 = tpu.matmul %213, %214, %cst_67 {dimension_numbers = #tpu.dot_dimension_numbers<[1], [0], [0], [1], [0, 0, 1, 1], [], []>} : vector<64x32xbf16>, vector<32x128xbf16>, vector<64x128xf32> -> vector<64x128xf32>
    %c0_68 = arith.constant 0 : index
    %c0_69 = arith.constant 0 : index
    %216 = vector.load %arg7[%c0_68, %c0_69] : memref<1x128xf32, #tpu.memory_space<vmem>>, vector<1x128xf32>
    %217 = vector.broadcast %216 : vector<1x128xf32> to vector<64x128xf32>
    %218 = arith.addf %215, %217 : vector<64x128xf32>
    %219 = vector.shape_cast %218 : vector<64x128xf32> to vector<8x8x128xf32>
    %c0_70 = arith.constant 0 : index
    %c0_71 = arith.constant 0 : index
    %c0_72 = arith.constant 0 : index
    %220 = vector.load %arg13[%c0_70, %c0_71, %c0_72] : memref<8x8x128xf32, #tpu.memory_space<vmem>>, vector<8x8x128xf32>
    tpu.vector_store %arg13[%c0_70, %c0_71, %c0_72], %219 {strides = array<i32>} : memref<8x8x128xf32, #tpu.memory_space<vmem>>, vector<8x8x128xf32>,
    %c0_73 = arith.constant 0 : index
    %c0_74 = arith.constant 0 : index
    %221 = vector.load %arg6[%c0_73, %c0_74] : memref<32x128xf32, #tpu.memory_space<vmem>>, vector<32x128xf32>
    %cst_75 = arith.constant 0.000000e+00 : f32
    %222 = vector.broadcast %cst_75 : f32 to vector<8x32xf32>
    %c0_i32_76 = arith.constant 0 : i32
    %223 = arith.index_cast %c0_i32_76 : i32 to index
    %c0_77 = arith.constant 0 : index
    %c0_78 = arith.constant 0 : index
    %224 = vector.load %arg13[%223, %c0_77, %c0_78] : memref<8x8x128xf32, #tpu.memory_space<vmem>>, vector<1x8x128xf32>
    %225 = vector.shape_cast %224 : vector<1x8x128xf32> to vector<8x128xf32>
    %cst_79 = arith.constant dense<0.000000e+00> : vector<8x128xf32>
    %226 = tpu.matmul %222, %221, %cst_79 {dimension_numbers = #tpu.dot_dimension_numbers<[1], [0], [0], [1], [0, 0, 1, 1], [], []>} : vector<8x32xf32>, vector<32x128xf32>, vector<8x128xf32> -> vector<8x128xf32>
    %227 = arith.addf %225, %226 : vector<8x128xf32>
    %228 = arith.negf %227 : vector<8x128xf32>
    %229 = math.exp %228 : vector<8x128xf32>
    %cst_80 = arith.constant 1.000000e+00 : f32
    %230 = vector.broadcast %cst_80 : f32 to vector<8x128xf32>
    %231 = arith.addf %230, %229 : vector<8x128xf32>
    %232 = arith.divf %230, %231 : vector<8x128xf32>
    %233 = math.tanh %227 : vector<8x128xf32>
    %234 = vector.extract_strided_slice %232 {offsets = [0, 0], sizes = [8, 32], strides = [1, 1]} : vector<8x128xf32> to vector<8x32xf32>
    %235 = vector.extract_strided_slice %232 {offsets = [0, 32], sizes = [8, 32], strides = [1, 1]} : vector<8x128xf32> to vector<8x32xf32>
    %236 = vector.extract_strided_slice %233 {offsets = [0, 64], sizes = [8, 32], strides = [1, 1]} : vector<8x128xf32> to vector<8x32xf32>
    %237 = vector.extract_strided_slice %232 {offsets = [0, 96], sizes = [8, 32], strides = [1, 1]} : vector<8x128xf32> to vector<8x32xf32>
    %238 = arith.mulf %235, %222 : vector<8x32xf32>
    %239 = arith.mulf %234, %236 : vector<8x32xf32>
    %240 = arith.addf %238, %239 : vector<8x32xf32>
    %241 = math.tanh %240 : vector<8x32xf32>
    %242 = arith.mulf %237, %241 : vector<8x32xf32>
    %243 = arith.index_cast %c0_i32_76 : i32 to index
    %c0_81 = arith.constant 0 : index
    %c0_82 = arith.constant 0 : index
    %244 = vector.load %arg15[%243, %c0_81, %c0_82] : memref<8x8x32xf32, #tpu.memory_space<vmem>>, vector<1x8x32xf32>
    %245 = vector.shape_cast %244 : vector<1x8x32xf32> to vector<8x32xf32>
    %246 = vector.shape_cast %242 : vector<8x32xf32> to vector<1x8x32xf32>
    tpu.vector_store %arg15[%243, %c0_81, %c0_82], %246 {strides = array<i32>} : memref<8x8x32xf32, #tpu.memory_space<vmem>>, vector<1x8x32xf32>,
    %c1_i32_83 = arith.constant 1 : i32
    %247 = arith.index_cast %c1_i32_83 : i32 to index
    %c0_84 = arith.constant 0 : index
    %c0_85 = arith.constant 0 : index
    %248 = vector.load %arg13[%247, %c0_84, %c0_85] : memref<8x8x128xf32, #tpu.memory_space<vmem>>, vector<1x8x128xf32>
    %249 = vector.shape_cast %248 : vector<1x8x128xf32> to vector<8x128xf32>
    %cst_86 = arith.constant dense<0.000000e+00> : vector<8x128xf32>
    %250 = tpu.matmul %242, %221, %cst_86 {dimension_numbers = #tpu.dot_dimension_numbers<[1], [0], [0], [1], [0, 0, 1, 1], [], []>} : vector<8x32xf32>, vector<32x128xf32>, vector<8x128xf32> -> vector<8x128xf32>
    %251 = arith.addf %249, %250 : vector<8x128xf32>
    %252 = arith.negf %251 : vector<8x128xf32>
    %253 = math.exp %252 : vector<8x128xf32>
    %cst_87 = arith.constant 1.000000e+00 : f32
    %254 = vector.broadcast %cst_87 : f32 to vector<8x128xf32>
    %255 = arith.addf %254, %253 : vector<8x128xf32>
    %256 = arith.divf %254, %255 : vector<8x128xf32>
    %257 = math.tanh %251 : vector<8x128xf32>
    %258 = vector.extract_strided_slice %256 {offsets = [0, 0], sizes = [8, 32], strides = [1, 1]} : vector<8x128xf32> to vector<8x32xf32>
    %259 = vector.extract_strided_slice %256 {offsets = [0, 32], sizes = [8, 32], strides = [1, 1]} : vector<8x128xf32> to vector<8x32xf32>
    %260 = vector.extract_strided_slice %257 {offsets = [0, 64], sizes = [8, 32], strides = [1, 1]} : vector<8x128xf32> to vector<8x32xf32>
    %261 = vector.extract_strided_slice %256 {offsets = [0, 96], sizes = [8, 32], strides = [1, 1]} : vector<8x128xf32> to vector<8x32xf32>
    %262 = arith.mulf %259, %240 : vector<8x32xf32>
    %263 = arith.mulf %258, %260 : vector<8x32xf32>
    %264 = arith.addf %262, %263 : vector<8x32xf32>
    %265 = math.tanh %264 : vector<8x32xf32>
    %266 = arith.mulf %261, %265 : vector<8x32xf32>
    %267 = arith.index_cast %c1_i32_83 : i32 to index
    %c0_88 = arith.constant 0 : index
    %c0_89 = arith.constant 0 : index
    %268 = vector.load %arg15[%267, %c0_88, %c0_89] : memref<8x8x32xf32, #tpu.memory_space<vmem>>, vector<1x8x32xf32>
    %269 = vector.shape_cast %268 : vector<1x8x32xf32> to vector<8x32xf32>
    %270 = vector.shape_cast %266 : vector<8x32xf32> to vector<1x8x32xf32>
    tpu.vector_store %arg15[%267, %c0_88, %c0_89], %270 {strides = array<i32>} : memref<8x8x32xf32, #tpu.memory_space<vmem>>, vector<1x8x32xf32>,
    %c2_i32_90 = arith.constant 2 : i32
    %271 = arith.index_cast %c2_i32_90 : i32 to index
    %c0_91 = arith.constant 0 : index
    %c0_92 = arith.constant 0 : index
    %272 = vector.load %arg13[%271, %c0_91, %c0_92] : memref<8x8x128xf32, #tpu.memory_space<vmem>>, vector<1x8x128xf32>
    %273 = vector.shape_cast %272 : vector<1x8x128xf32> to vector<8x128xf32>
    %cst_93 = arith.constant dense<0.000000e+00> : vector<8x128xf32>
    %274 = tpu.matmul %266, %221, %cst_93 {dimension_numbers = #tpu.dot_dimension_numbers<[1], [0], [0], [1], [0, 0, 1, 1], [], []>} : vector<8x32xf32>, vector<32x128xf32>, vector<8x128xf32> -> vector<8x128xf32>
    %275 = arith.addf %273, %274 : vector<8x128xf32>
    %276 = arith.negf %275 : vector<8x128xf32>
    %277 = math.exp %276 : vector<8x128xf32>
    %cst_94 = arith.constant 1.000000e+00 : f32
    %278 = vector.broadcast %cst_94 : f32 to vector<8x128xf32>
    %279 = arith.addf %278, %277 : vector<8x128xf32>
    %280 = arith.divf %278, %279 : vector<8x128xf32>
    %281 = math.tanh %275 : vector<8x128xf32>
    %282 = vector.extract_strided_slice %280 {offsets = [0, 0], sizes = [8, 32], strides = [1, 1]} : vector<8x128xf32> to vector<8x32xf32>
    %283 = vector.extract_strided_slice %280 {offsets = [0, 32], sizes = [8, 32], strides = [1, 1]} : vector<8x128xf32> to vector<8x32xf32>
    %284 = vector.extract_strided_slice %281 {offsets = [0, 64], sizes = [8, 32], strides = [1, 1]} : vector<8x128xf32> to vector<8x32xf32>
    %285 = vector.extract_strided_slice %280 {offsets = [0, 96], sizes = [8, 32], strides = [1, 1]} : vector<8x128xf32> to vector<8x32xf32>
    %286 = arith.mulf %283, %264 : vector<8x32xf32>
    %287 = arith.mulf %282, %284 : vector<8x32xf32>
    %288 = arith.addf %286, %287 : vector<8x32xf32>
    %289 = math.tanh %288 : vector<8x32xf32>
    %290 = arith.mulf %285, %289 : vector<8x32xf32>
    %291 = arith.index_cast %c2_i32_90 : i32 to index
    %c0_95 = arith.constant 0 : index
    %c0_96 = arith.constant 0 : index
    %292 = vector.load %arg15[%291, %c0_95, %c0_96] : memref<8x8x32xf32, #tpu.memory_space<vmem>>, vector<1x8x32xf32>
    %293 = vector.shape_cast %292 : vector<1x8x32xf32> to vector<8x32xf32>
    %294 = vector.shape_cast %290 : vector<8x32xf32> to vector<1x8x32xf32>
    tpu.vector_store %arg15[%291, %c0_95, %c0_96], %294 {strides = array<i32>} : memref<8x8x32xf32, #tpu.memory_space<vmem>>, vector<1x8x32xf32>,
    %c3_i32_97 = arith.constant 3 : i32
    %295 = arith.index_cast %c3_i32_97 : i32 to index
    %c0_98 = arith.constant 0 : index
    %c0_99 = arith.constant 0 : index
    %296 = vector.load %arg13[%295, %c0_98, %c0_99] : memref<8x8x128xf32, #tpu.memory_space<vmem>>, vector<1x8x128xf32>
    %297 = vector.shape_cast %296 : vector<1x8x128xf32> to vector<8x128xf32>
    %cst_100 = arith.constant dense<0.000000e+00> : vector<8x128xf32>
    %298 = tpu.matmul %290, %221, %cst_100 {dimension_numbers = #tpu.dot_dimension_numbers<[1], [0], [0], [1], [0, 0, 1, 1], [], []>} : vector<8x32xf32>, vector<32x128xf32>, vector<8x128xf32> -> vector<8x128xf32>
    %299 = arith.addf %297, %298 : vector<8x128xf32>
    %300 = arith.negf %299 : vector<8x128xf32>
    %301 = math.exp %300 : vector<8x128xf32>
    %cst_101 = arith.constant 1.000000e+00 : f32
    %302 = vector.broadcast %cst_101 : f32 to vector<8x128xf32>
    %303 = arith.addf %302, %301 : vector<8x128xf32>
    %304 = arith.divf %302, %303 : vector<8x128xf32>
    %305 = math.tanh %299 : vector<8x128xf32>
    %306 = vector.extract_strided_slice %304 {offsets = [0, 0], sizes = [8, 32], strides = [1, 1]} : vector<8x128xf32> to vector<8x32xf32>
    %307 = vector.extract_strided_slice %304 {offsets = [0, 32], sizes = [8, 32], strides = [1, 1]} : vector<8x128xf32> to vector<8x32xf32>
    %308 = vector.extract_strided_slice %305 {offsets = [0, 64], sizes = [8, 32], strides = [1, 1]} : vector<8x128xf32> to vector<8x32xf32>
    %309 = vector.extract_strided_slice %304 {offsets = [0, 96], sizes = [8, 32], strides = [1, 1]} : vector<8x128xf32> to vector<8x32xf32>
    %310 = arith.mulf %307, %288 : vector<8x32xf32>
    %311 = arith.mulf %306, %308 : vector<8x32xf32>
    %312 = arith.addf %310, %311 : vector<8x32xf32>
    %313 = math.tanh %312 : vector<8x32xf32>
    %314 = arith.mulf %309, %313 : vector<8x32xf32>
    %315 = arith.index_cast %c3_i32_97 : i32 to index
    %c0_102 = arith.constant 0 : index
    %c0_103 = arith.constant 0 : index
    %316 = vector.load %arg15[%315, %c0_102, %c0_103] : memref<8x8x32xf32, #tpu.memory_space<vmem>>, vector<1x8x32xf32>
    %317 = vector.shape_cast %316 : vector<1x8x32xf32> to vector<8x32xf32>
    %318 = vector.shape_cast %314 : vector<8x32xf32> to vector<1x8x32xf32>
    tpu.vector_store %arg15[%315, %c0_102, %c0_103], %318 {strides = array<i32>} : memref<8x8x32xf32, #tpu.memory_space<vmem>>, vector<1x8x32xf32>,
    %c4_i32_104 = arith.constant 4 : i32
    %319 = arith.index_cast %c4_i32_104 : i32 to index
    %c0_105 = arith.constant 0 : index
    %c0_106 = arith.constant 0 : index
    %320 = vector.load %arg13[%319, %c0_105, %c0_106] : memref<8x8x128xf32, #tpu.memory_space<vmem>>, vector<1x8x128xf32>
    %321 = vector.shape_cast %320 : vector<1x8x128xf32> to vector<8x128xf32>
    %cst_107 = arith.constant dense<0.000000e+00> : vector<8x128xf32>
    %322 = tpu.matmul %314, %221, %cst_107 {dimension_numbers = #tpu.dot_dimension_numbers<[1], [0], [0], [1], [0, 0, 1, 1], [], []>} : vector<8x32xf32>, vector<32x128xf32>, vector<8x128xf32> -> vector<8x128xf32>
    %323 = arith.addf %321, %322 : vector<8x128xf32>
    %324 = arith.negf %323 : vector<8x128xf32>
    %325 = math.exp %324 : vector<8x128xf32>
    %cst_108 = arith.constant 1.000000e+00 : f32
    %326 = vector.broadcast %cst_108 : f32 to vector<8x128xf32>
    %327 = arith.addf %326, %325 : vector<8x128xf32>
    %328 = arith.divf %326, %327 : vector<8x128xf32>
    %329 = math.tanh %323 : vector<8x128xf32>
    %330 = vector.extract_strided_slice %328 {offsets = [0, 0], sizes = [8, 32], strides = [1, 1]} : vector<8x128xf32> to vector<8x32xf32>
    %331 = vector.extract_strided_slice %328 {offsets = [0, 32], sizes = [8, 32], strides = [1, 1]} : vector<8x128xf32> to vector<8x32xf32>
    %332 = vector.extract_strided_slice %329 {offsets = [0, 64], sizes = [8, 32], strides = [1, 1]} : vector<8x128xf32> to vector<8x32xf32>
    %333 = vector.extract_strided_slice %328 {offsets = [0, 96], sizes = [8, 32], strides = [1, 1]} : vector<8x128xf32> to vector<8x32xf32>
    %334 = arith.mulf %331, %312 : vector<8x32xf32>
    %335 = arith.mulf %330, %332 : vector<8x32xf32>
    %336 = arith.addf %334, %335 : vector<8x32xf32>
    %337 = math.tanh %336 : vector<8x32xf32>
    %338 = arith.mulf %333, %337 : vector<8x32xf32>
    %339 = arith.index_cast %c4_i32_104 : i32 to index
    %c0_109 = arith.constant 0 : index
    %c0_110 = arith.constant 0 : index
    %340 = vector.load %arg15[%339, %c0_109, %c0_110] : memref<8x8x32xf32, #tpu.memory_space<vmem>>, vector<1x8x32xf32>
    %341 = vector.shape_cast %340 : vector<1x8x32xf32> to vector<8x32xf32>
    %342 = vector.shape_cast %338 : vector<8x32xf32> to vector<1x8x32xf32>
    tpu.vector_store %arg15[%339, %c0_109, %c0_110], %342 {strides = array<i32>} : memref<8x8x32xf32, #tpu.memory_space<vmem>>, vector<1x8x32xf32>,
    %c5_i32_111 = arith.constant 5 : i32
    %343 = arith.index_cast %c5_i32_111 : i32 to index
    %c0_112 = arith.constant 0 : index
    %c0_113 = arith.constant 0 : index
    %344 = vector.load %arg13[%343, %c0_112, %c0_113] : memref<8x8x128xf32, #tpu.memory_space<vmem>>, vector<1x8x128xf32>
    %345 = vector.shape_cast %344 : vector<1x8x128xf32> to vector<8x128xf32>
    %cst_114 = arith.constant dense<0.000000e+00> : vector<8x128xf32>
    %346 = tpu.matmul %338, %221, %cst_114 {dimension_numbers = #tpu.dot_dimension_numbers<[1], [0], [0], [1], [0, 0, 1, 1], [], []>} : vector<8x32xf32>, vector<32x128xf32>, vector<8x128xf32> -> vector<8x128xf32>
    %347 = arith.addf %345, %346 : vector<8x128xf32>
    %348 = arith.negf %347 : vector<8x128xf32>
    %349 = math.exp %348 : vector<8x128xf32>
    %cst_115 = arith.constant 1.000000e+00 : f32
    %350 = vector.broadcast %cst_115 : f32 to vector<8x128xf32>
    %351 = arith.addf %350, %349 : vector<8x128xf32>
    %352 = arith.divf %350, %351 : vector<8x128xf32>
    %353 = math.tanh %347 : vector<8x128xf32>
    %354 = vector.extract_strided_slice %352 {offsets = [0, 0], sizes = [8, 32], strides = [1, 1]} : vector<8x128xf32> to vector<8x32xf32>
    %355 = vector.extract_strided_slice %352 {offsets = [0, 32], sizes = [8, 32], strides = [1, 1]} : vector<8x128xf32> to vector<8x32xf32>
    %356 = vector.extract_strided_slice %353 {offsets = [0, 64], sizes = [8, 32], strides = [1, 1]} : vector<8x128xf32> to vector<8x32xf32>
    %357 = vector.extract_strided_slice %352 {offsets = [0, 96], sizes = [8, 32], strides = [1, 1]} : vector<8x128xf32> to vector<8x32xf32>
    %358 = arith.mulf %355, %336 : vector<8x32xf32>
    %359 = arith.mulf %354, %356 : vector<8x32xf32>
    %360 = arith.addf %358, %359 : vector<8x32xf32>
    %361 = math.tanh %360 : vector<8x32xf32>
    %362 = arith.mulf %357, %361 : vector<8x32xf32>
    %363 = arith.index_cast %c5_i32_111 : i32 to index
    %c0_116 = arith.constant 0 : index
    %c0_117 = arith.constant 0 : index
    %364 = vector.load %arg15[%363, %c0_116, %c0_117] : memref<8x8x32xf32, #tpu.memory_space<vmem>>, vector<1x8x32xf32>
    %365 = vector.shape_cast %364 : vector<1x8x32xf32> to vector<8x32xf32>
    %366 = vector.shape_cast %362 : vector<8x32xf32> to vector<1x8x32xf32>
    tpu.vector_store %arg15[%363, %c0_116, %c0_117], %366 {strides = array<i32>} : memref<8x8x32xf32, #tpu.memory_space<vmem>>, vector<1x8x32xf32>,
    %c6_i32_118 = arith.constant 6 : i32
    %367 = arith.index_cast %c6_i32_118 : i32 to index
    %c0_119 = arith.constant 0 : index
    %c0_120 = arith.constant 0 : index
    %368 = vector.load %arg13[%367, %c0_119, %c0_120] : memref<8x8x128xf32, #tpu.memory_space<vmem>>, vector<1x8x128xf32>
    %369 = vector.shape_cast %368 : vector<1x8x128xf32> to vector<8x128xf32>
    %cst_121 = arith.constant dense<0.000000e+00> : vector<8x128xf32>
    %370 = tpu.matmul %362, %221, %cst_121 {dimension_numbers = #tpu.dot_dimension_numbers<[1], [0], [0], [1], [0, 0, 1, 1], [], []>} : vector<8x32xf32>, vector<32x128xf32>, vector<8x128xf32> -> vector<8x128xf32>
    %371 = arith.addf %369, %370 : vector<8x128xf32>
    %372 = arith.negf %371 : vector<8x128xf32>
    %373 = math.exp %372 : vector<8x128xf32>
    %cst_122 = arith.constant 1.000000e+00 : f32
    %374 = vector.broadcast %cst_122 : f32 to vector<8x128xf32>
    %375 = arith.addf %374, %373 : vector<8x128xf32>
    %376 = arith.divf %374, %375 : vector<8x128xf32>
    %377 = math.tanh %371 : vector<8x128xf32>
    %378 = vector.extract_strided_slice %376 {offsets = [0, 0], sizes = [8, 32], strides = [1, 1]} : vector<8x128xf32> to vector<8x32xf32>
    %379 = vector.extract_strided_slice %376 {offsets = [0, 32], sizes = [8, 32], strides = [1, 1]} : vector<8x128xf32> to vector<8x32xf32>
    %380 = vector.extract_strided_slice %377 {offsets = [0, 64], sizes = [8, 32], strides = [1, 1]} : vector<8x128xf32> to vector<8x32xf32>
    %381 = vector.extract_strided_slice %376 {offsets = [0, 96], sizes = [8, 32], strides = [1, 1]} : vector<8x128xf32> to vector<8x32xf32>
    %382 = arith.mulf %379, %360 : vector<8x32xf32>
    %383 = arith.mulf %378, %380 : vector<8x32xf32>
    %384 = arith.addf %382, %383 : vector<8x32xf32>
    %385 = math.tanh %384 : vector<8x32xf32>
    %386 = arith.mulf %381, %385 : vector<8x32xf32>
    %387 = arith.index_cast %c6_i32_118 : i32 to index
    %c0_123 = arith.constant 0 : index
    %c0_124 = arith.constant 0 : index
    %388 = vector.load %arg15[%387, %c0_123, %c0_124] : memref<8x8x32xf32, #tpu.memory_space<vmem>>, vector<1x8x32xf32>
    %389 = vector.shape_cast %388 : vector<1x8x32xf32> to vector<8x32xf32>
    %390 = vector.shape_cast %386 : vector<8x32xf32> to vector<1x8x32xf32>
    tpu.vector_store %arg15[%387, %c0_123, %c0_124], %390 {strides = array<i32>} : memref<8x8x32xf32, #tpu.memory_space<vmem>>, vector<1x8x32xf32>,
    %c7_i32_125 = arith.constant 7 : i32
    %391 = arith.index_cast %c7_i32_125 : i32 to index
    %c0_126 = arith.constant 0 : index
    %c0_127 = arith.constant 0 : index
    %392 = vector.load %arg13[%391, %c0_126, %c0_127] : memref<8x8x128xf32, #tpu.memory_space<vmem>>, vector<1x8x128xf32>
    %393 = vector.shape_cast %392 : vector<1x8x128xf32> to vector<8x128xf32>
    %cst_128 = arith.constant dense<0.000000e+00> : vector<8x128xf32>
    %394 = tpu.matmul %386, %221, %cst_128 {dimension_numbers = #tpu.dot_dimension_numbers<[1], [0], [0], [1], [0, 0, 1, 1], [], []>} : vector<8x32xf32>, vector<32x128xf32>, vector<8x128xf32> -> vector<8x128xf32>
    %395 = arith.addf %393, %394 : vector<8x128xf32>
    %396 = arith.negf %395 : vector<8x128xf32>
    %397 = math.exp %396 : vector<8x128xf32>
    %cst_129 = arith.constant 1.000000e+00 : f32
    %398 = vector.broadcast %cst_129 : f32 to vector<8x128xf32>
    %399 = arith.addf %398, %397 : vector<8x128xf32>
    %400 = arith.divf %398, %399 : vector<8x128xf32>
    %401 = math.tanh %395 : vector<8x128xf32>
    %402 = vector.extract_strided_slice %400 {offsets = [0, 0], sizes = [8, 32], strides = [1, 1]} : vector<8x128xf32> to vector<8x32xf32>
    %403 = vector.extract_strided_slice %400 {offsets = [0, 32], sizes = [8, 32], strides = [1, 1]} : vector<8x128xf32> to vector<8x32xf32>
    %404 = vector.extract_strided_slice %401 {offsets = [0, 64], sizes = [8, 32], strides = [1, 1]} : vector<8x128xf32> to vector<8x32xf32>
    %405 = vector.extract_strided_slice %400 {offsets = [0, 96], sizes = [8, 32], strides = [1, 1]} : vector<8x128xf32> to vector<8x32xf32>
    %406 = arith.mulf %403, %384 : vector<8x32xf32>
    %407 = arith.mulf %402, %404 : vector<8x32xf32>
    %408 = arith.addf %406, %407 : vector<8x32xf32>
    %409 = math.tanh %408 : vector<8x32xf32>
    %410 = arith.mulf %405, %409 : vector<8x32xf32>
    %411 = arith.index_cast %c7_i32_125 : i32 to index
    %c0_130 = arith.constant 0 : index
    %c0_131 = arith.constant 0 : index
    %412 = vector.load %arg15[%411, %c0_130, %c0_131] : memref<8x8x32xf32, #tpu.memory_space<vmem>>, vector<1x8x32xf32>
    %413 = vector.shape_cast %412 : vector<1x8x32xf32> to vector<8x32xf32>
    %414 = vector.shape_cast %410 : vector<8x32xf32> to vector<1x8x32xf32>
    tpu.vector_store %arg15[%411, %c0_130, %c0_131], %414 {strides = array<i32>} : memref<8x8x32xf32, #tpu.memory_space<vmem>>, vector<1x8x32xf32>,
    %c8_i32_132 = arith.constant 8 : i32
    %c0_133 = arith.constant 0 : index
    %c0_134 = arith.constant 0 : index
    %c0_135 = arith.constant 0 : index
    %415 = vector.load %arg15[%c0_133, %c0_134, %c0_135] : memref<8x8x32xf32, #tpu.memory_space<vmem>>, vector<8x8x32xf32>
    %416 = vector.shape_cast %415 : vector<8x8x32xf32> to vector<64x32xf32>
    %417 = arith.truncf %416 : vector<64x32xf32> to vector<64x32xbf16>
    %c0_136 = arith.constant 0 : index
    %c0_137 = arith.constant 0 : index
    %418 = vector.load %arg8[%c0_136, %c0_137] : memref<32x32xbf16, #tpu.memory_space<vmem>>, vector<32x32xbf16>
    %cst_138 = arith.constant dense<0.000000e+00> : vector<64x32xf32>
    %419 = tpu.matmul %417, %418, %cst_138 {dimension_numbers = #tpu.dot_dimension_numbers<[1], [0], [0], [1], [0, 0, 1, 1], [], []>} : vector<64x32xbf16>, vector<32x32xbf16>, vector<64x32xf32> -> vector<64x32xf32>
    %c0_139 = arith.constant 0 : index
    %c0_140 = arith.constant 0 : index
    %420 = vector.load %arg9[%c0_139, %c0_140] : memref<1x32xf32, #tpu.memory_space<vmem>>, vector<1x32xf32>
    %421 = vector.broadcast %420 : vector<1x32xf32> to vector<64x32xf32>
    %422 = arith.addf %419, %421 : vector<64x32xf32>
    %cst_141 = arith.constant 0.000000e+00 : f32
    %423 = vector.broadcast %cst_141 : f32 to vector<64x32xf32>
    %424 = arith.maximumf %422, %423 : vector<64x32xf32>
    %425 = arith.truncf %424 : vector<64x32xf32> to vector<64x32xbf16>
    %c0_142 = arith.constant 0 : index
    %c0_143 = arith.constant 0 : index
    %426 = vector.load %arg10[%c0_142, %c0_143] : memref<32x128xbf16, #tpu.memory_space<vmem>>, vector<32x128xbf16>
    %cst_144 = arith.constant dense<0.000000e+00> : vector<64x128xf32>
    %427 = tpu.matmul %425, %426, %cst_144 {dimension_numbers = #tpu.dot_dimension_numbers<[1], [0], [0], [1], [0, 0, 1, 1], [], []>} : vector<64x32xbf16>, vector<32x128xbf16>, vector<64x128xf32> -> vector<64x128xf32>
    %c0_145 = arith.constant 0 : index
    %c0_146 = arith.constant 0 : index
    %428 = vector.load %arg11[%c0_145, %c0_146] : memref<1x128xf32, #tpu.memory_space<vmem>>, vector<1x128xf32>
    %429 = vector.broadcast %428 : vector<1x128xf32> to vector<64x128xf32>
    %430 = arith.addf %427, %429 : vector<64x128xf32>
    %cst_147 = arith.constant dense<0xFF800000> : vector<64xf32>
    %431 = vector.multi_reduction <maximumf>, %430, %cst_147 [1] : vector<64x128xf32> to vector<64xf32>
    %432 = vector.shape_cast %431 : vector<64xf32> to vector<64x1xf32>
    %433 = vector.broadcast %432 : vector<64x1xf32> to vector<64x128xf32>
    %434 = arith.subf %430, %433 : vector<64x128xf32>
    %435 = math.exp %434 : vector<64x128xf32>
    %cst_148 = arith.constant dense<0.000000e+00> : vector<64xf32>
    %436 = vector.multi_reduction <add>, %435, %cst_148 [1] : vector<64x128xf32> to vector<64xf32>
    %437 = vector.shape_cast %436 : vector<64xf32> to vector<64x1xf32>
    %438 = math.log %437 : vector<64x1xf32>
    %439 = arith.addf %432, %438 : vector<64x1xf32>
    %440 = vector.broadcast %439 : vector<64x1xf32> to vector<64x128xf32>
    %441 = arith.subf %430, %440 : vector<64x128xf32>
    %c0_149 = arith.constant 0 : index
    %c0_150 = arith.constant 0 : index
    %442 = vector.load %arg12[%c0_149, %c0_150] : memref<64x128xf32, #tpu.memory_space<vmem>>, vector<64x128xf32>
    tpu.vector_store %arg12[%c0_149, %c0_150], %441 {strides = array<i32>} : memref<64x128xf32, #tpu.memory_space<vmem>>, vector<64x128xf32>,
    return
  }
}

</mosaic_0001>

<llo_original>
// kernel: lstm_model_forward.1
$region0: #{lstm_model_forward.1}
  #allocation0 [shape = 'u32[]', space=smem, size = 0x4, offset = 0x4, fixed_abs, tag = 'smem constant byte address 0x4 - core index']
  #allocation1 [shape = 'u32[72,128]{1,0:T(1,128)}', space=vmem, size = 0x9000, scoped, tag = 'internal scratch']
  #allocation2 [shape = 'f32[8,8,128]{2,1,0:T(8,128)}', space=vmem, size = 0x8000, scoped, tag = 'scratch operand']
  #allocation3 [shape = 'f32[8,8,32]{2,1,0:T(8,128)}', space=vmem, size = 0x8000, scoped, tag = 'scratch operand']
  #allocation4 [shape = 'f32[8,8,32]{2,1,0:T(8,128)}', space=vmem, size = 0x8000, scoped, tag = 'scratch operand']
  %s0 = inlined_call_operand.vmem [shape: s32[64,1], index: 0, kind: input, shape index: {}]
  %s1 = inlined_call_operand.vmem [shape: bf16[64,32], index: 1, kind: input, shape index: {}]
  %s2 = inlined_call_operand.vmem [shape: bf16[32,128], index: 2, kind: input, shape index: {}]
  %s3 = inlined_call_operand.vmem [shape: f32[32,128], index: 3, kind: input, shape index: {}]
  %s4 = inlined_call_operand.vmem [shape: f32[1,128], index: 4, kind: input, shape index: {}]
  %s5 = inlined_call_operand.vmem [shape: bf16[32,128], index: 5, kind: input, shape index: {}]
  %s6 = inlined_call_operand.vmem [shape: f32[32,128], index: 6, kind: input, shape index: {}]
  %s7 = inlined_call_operand.vmem [shape: f32[1,128], index: 7, kind: input, shape index: {}]
  %s8 = inlined_call_operand.vmem [shape: bf16[32,32], index: 8, kind: input, shape index: {}]
  %s9 = inlined_call_operand.vmem [shape: f32[1,32], index: 9, kind: input, shape index: {}]
  %s10 = inlined_call_operand.vmem [shape: bf16[32,128], index: 10, kind: input, shape index: {}]
  %s11 = inlined_call_operand.vmem [shape: f32[1,128], index: 11, kind: input, shape index: {}]
  %s12 = inlined_call_operand.vmem [shape: f32[64,128], index: 12, kind: output, shape index: {}]
  %s13 = sld [smem:[#allocation0]]
  $region58: #{lstm_model_forward.1} parent=0
    _
  %s15 = ssub.s32 1, %s13
  %s16 = scalar_select 0, %s15, %s13
  // Predicated region
  $region2: #{lstm_model_forward.1} parent=0 // pred_check
    _
  $region3: #{lstm_model_forward.1} parent=0 // pred_check_branch
    %18 = sbr.rel (0) target = $region5
  $region4: #{lstm_model_forward.1} parent=0 // pred_region
    _
  $region5: #{lstm_model_forward.1} parent=0 // pred_fallthru
    _
  // Predicated region
  $region6: #{lstm_model_forward.1} parent=0 // pred_check
    _
  $region7: #{lstm_model_forward.1} parent=0 // pred_check_branch
    %20 = sbr.rel (0) target = $region9
  $region8: #{lstm_model_forward.1} parent=0 // pred_region
    _
  $region9: #{lstm_model_forward.1} parent=0 // pred_fallthru
    _
  // Predicated region
  $region10: #{lstm_model_forward.1} parent=0 // pred_check
    _
  $region11: #{lstm_model_forward.1} parent=0 // pred_check_branch
    %22 = sbr.rel (0) target = $region13
  $region12: #{lstm_model_forward.1} parent=0 // pred_region
    _
  $region13: #{lstm_model_forward.1} parent=0 // pred_fallthru
    _
  // Predicated region
  $region14: #{lstm_model_forward.1} parent=0 // pred_check
    _
  $region15: #{lstm_model_forward.1} parent=0 // pred_check_branch
    %24 = sbr.rel (0) target = $region17
  $region16: #{lstm_model_forward.1} parent=0 // pred_region
    _
  $region17: #{lstm_model_forward.1} parent=0 // pred_fallthru
    _
  // Predicated region
  $region18: #{lstm_model_forward.1} parent=0 // pred_check
    _
  $region19: #{lstm_model_forward.1} parent=0 // pred_check_branch
    %26 = sbr.rel (0) target = $region21
  $region20: #{lstm_model_forward.1} parent=0 // pred_region
    _
  $region21: #{lstm_model_forward.1} parent=0 // pred_fallthru
    _
  // Predicated region
  $region22: #{lstm_model_forward.1} parent=0 // pred_check
    _
  $region23: #{lstm_model_forward.1} parent=0 // pred_check_branch
    %28 = sbr.rel (0) target = $region25
  $region24: #{lstm_model_forward.1} parent=0 // pred_region
    _
  $region25: #{lstm_model_forward.1} parent=0 // pred_fallthru
    _
  // Predicated region
  $region26: #{lstm_model_forward.1} parent=0 // pred_check
    _
  $region27: #{lstm_model_forward.1} parent=0 // pred_check_branch
    %30 = sbr.rel (0) target = $region29
  $region28: #{lstm_model_forward.1} parent=0 // pred_region
    _
  $region29: #{lstm_model_forward.1} parent=0 // pred_fallthru
    _
  // Predicated region
  $region30: #{lstm_model_forward.1} parent=0 // pred_check
    _
  $region31: #{lstm_model_forward.1} parent=0 // pred_check_branch
    %32 = sbr.rel (0) target = $region33
  $region32: #{lstm_model_forward.1} parent=0 // pred_region
    _
  $region33: #{lstm_model_forward.1} parent=0 // pred_fallthru
    _
  // Predicated region
  $region34: #{lstm_model_forward.1} parent=0 // pred_check
    _
  $region35: #{lstm_model_forward.1} parent=0 // pred_check_branch
    %34 = sbr.rel (0) target = $region37
  $region36: #{lstm_model_forward.1} parent=0 // pred_region
    _
  $region37: #{lstm_model_forward.1} parent=0 // pred_fallthru
    _
  // Predicated region
  $region38: #{lstm_model_forward.1} parent=0 // pred_check
    _
  $region39: #{lstm_model_forward.1} parent=0 // pred_check_branch
    %36 = sbr.rel (0) target = $region41
  $region40: #{lstm_model_forward.1} parent=0 // pred_region
    _
  $region41: #{lstm_model_forward.1} parent=0 // pred_fallthru
    _
  // Predicated region
  $region42: #{lstm_model_forward.1} parent=0 // pred_check
    _
  $region43: #{lstm_model_forward.1} parent=0 // pred_check_branch
    %38 = sbr.rel (0) target = $region45
  $region44: #{lstm_model_forward.1} parent=0 // pred_region
    _
  $region45: #{lstm_model_forward.1} parent=0 // pred_fallthru
    _
  // Predicated region
  $region46: #{lstm_model_forward.1} parent=0 // pred_check
    _
  $region47: #{lstm_model_forward.1} parent=0 // pred_check_branch
    %40 = sbr.rel (0) target = $region49
  $region48: #{lstm_model_forward.1} parent=0 // pred_region
    _
  $region49: #{lstm_model_forward.1} parent=0 // pred_fallthru
    _
  %v42 = vld [vmem:[%s0] sm:$0xff]
  %v43 = vld [vmem:[%s0 + $0x8] sm:$0xff]
  %v44 = vld [vmem:[%s0 + $0x10] sm:$0xff]
  %v45 = vld [vmem:[%s0 + $0x18] sm:$0xff]
  %v46 = vld [vmem:[%s0 + $0x20] sm:$0xff]
  %v47 = vld [vmem:[%s0 + $0x28] sm:$0xff]
  %v48 = vld [vmem:[%s0 + $0x30] sm:$0xff]
  %v49 = vld [vmem:[%s0 + $0x38] sm:$0xff]
  %v50 = vlaneseq
  %v51 = vand.u32 %v50, 127
  %52 = vset.pattern.permute.xlu0 0
  %53 = vperm.xlu0 %52, %v42
  %v54 = vpop.permute.xlu0 %53
  %55 = vset.pattern.permute.xlu0 0
  %56 = vperm.xlu0 %55, %v43
  %v57 = vpop.permute.xlu0 %56
  %58 = vset.pattern.permute.xlu0 0
  %59 = vperm.xlu0 %58, %v44
  %v60 = vpop.permute.xlu0 %59
  %61 = vset.pattern.permute.xlu0 0
  %62 = vperm.xlu0 %61, %v45
  %v63 = vpop.permute.xlu0 %62
  %64 = vset.pattern.permute.xlu0 0
  %65 = vperm.xlu0 %64, %v46
  %v66 = vpop.permute.xlu0 %65
  %67 = vset.pattern.permute.xlu0 0
  %68 = vperm.xlu0 %67, %v47
  %v69 = vpop.permute.xlu0 %68
  %70 = vset.pattern.permute.xlu0 0
  %71 = vperm.xlu0 %70, %v48
  %v72 = vpop.permute.xlu0 %71
  %73 = vset.pattern.permute.xlu0 0
  %74 = vperm.xlu0 %73, %v49
  %v75 = vpop.permute.xlu0 %74
  %vm76 = vcmp.eq.s32.totalorder %v54, %v51
  %vm77 = vcmp.eq.s32.totalorder %v57, %v51
  %vm78 = vcmp.eq.s32.totalorder %v60, %v51
  %vm79 = vcmp.eq.s32.totalorder %v63, %v51
  %vm80 = vcmp.eq.s32.totalorder %v66, %v51
  %vm81 = vcmp.eq.s32.totalorder %v69, %v51
  %vm82 = vcmp.eq.s32.totalorder %v72, %v51
  %vm83 = vcmp.eq.s32.totalorder %v75, %v51
  %v84 = vsel %vm76, 1, 0
  %v85 = vsel %vm77, 1, 0
  %v86 = vsel %vm78, 1, 0
  %v87 = vsel %vm79, 1, 0
  %v88 = vsel %vm80, 1, 0
  %v89 = vsel %vm81, 1, 0
  %v90 = vsel %vm82, 1, 0
  %v91 = vsel %vm83, 1, 0
  %v92 = vcvt.s32.f32 %v84
  %v93 = vcvt.s32.f32 %v85
  %v94 = vcvt.s32.f32 %v86
  %v95 = vcvt.s32.f32 %v87
  %v96 = vcvt.s32.f32 %v88
  %v97 = vcvt.s32.f32 %v89
  %v98 = vcvt.s32.f32 %v90
  %v99 = vcvt.s32.f32 %v91
  %v100 = vpack.c.bf16 %v93, %v92
  %v101 = vpack.c.bf16 %v95, %v94
  %v102 = vpack.c.bf16 %v97, %v96
  %v103 = vpack.c.bf16 %v99, %v98
  %v104 = vld [vmem:[%s1] sm:$0xf]
  %v105 = vld [vmem:[%s1 + $0x4] sm:$0xf]
  %v106 = vld [vmem:[%s1 + $0x8] sm:$0xf]
  %v107 = vld [vmem:[%s1 + $0xc] sm:$0xf]
  %v108 = vld [vmem:[%s1 + $0x10] sm:$0xf]
  %v109 = vld [vmem:[%s1 + $0x14] sm:$0xf]
  %v110 = vld [vmem:[%s1 + $0x18] sm:$0xf]
  %v111 = vld [vmem:[%s1 + $0x1c] sm:$0xf]
  %v120 = vunpack.c.l.b16 %v104
  %v121 = vunpack.c.l.b16 %v105
  %v122 = vunpack.c.l.b16 %v106
  %v123 = vunpack.c.l.b16 %v107
  %v124 = vunpack.c.l.b16 %v108
  %v125 = vunpack.c.l.b16 %v109
  %v126 = vunpack.c.l.b16 %v110
  %v127 = vunpack.c.l.b16 %v111
  %v128 = vpack.c.b16 %v121, %v120
  %v129 = vpack.c.b16 %v123, %v122
  %v130 = vpack.c.b16 %v125, %v124
  %v131 = vpack.c.b16 %v127, %v126
  %vm136 = vcmask 523264
  %v138 = vsel %vm136, %v100, 0
  %v141 = vsel %vm136, %v101, 0
  %v144 = vsel %vm136, %v102, 0
  %v147 = vsel %vm136, %v103, 0
  %149 = vmatpush.bf16.msra.mxu0 0
  %150 = vmatpush.bf16.msra.mxu0 0
  %151 = vmatpush.bf16.msra.mxu0 0
  %152 = vmatpush.bf16.msra.mxu0 0
  %153 = vmatpush.bf16.msra.mxu0 %v131
  %154 = vmatpush.bf16.msra.mxu0 %v130
  %155 = vmatpush.bf16.msra.mxu0 %v129
  %156 = vmatpush.bf16.msra.mxu0 %v128
  %157 = vmatmul.bf16.gmra.mxu0 %v138
  %v158 = vpop.f32.mrf.mxu0
  %v159 = vadd.f32 0.0, %v158
  %v160 = vpop.f32.mrf.mxu0
  %v161 = vadd.f32 0.0, %v160
  %162 = vmatmul.bf16.gmra.mxu0 %v141
  %v163 = vpop.f32.mrf.mxu0
  %v164 = vadd.f32 0.0, %v163
  %v165 = vpop.f32.mrf.mxu0
  %v166 = vadd.f32 0.0, %v165
  %167 = vmatmul.bf16.gmra.mxu0 %v144
  %v168 = vpop.f32.mrf.mxu0
  %v169 = vadd.f32 0.0, %v168
  %v170 = vpop.f32.mrf.mxu0
  %v171 = vadd.f32 0.0, %v170
  %172 = vmatmul.bf16.gmra.mxu0 %v147
  %v173 = vpop.f32.mrf.mxu0
  %v174 = vadd.f32 0.0, %v173
  %v175 = vpop.f32.mrf.mxu0
  %v176 = vadd.f32 0.0, %v175
  %177 = vdwg.mxu0
  %v178 = vpack.c.bf16 %v161, %v159
  %v179 = vpack.c.bf16 %v166, %v164
  %v180 = vpack.c.bf16 %v171, %v169
  %v181 = vpack.c.bf16 %v176, %v174
  %v182 = vld [vmem:[%s2] sm:$0xf]
  %v183 = vld [vmem:[%s2 + $0x4] sm:$0xf]
  %v184 = vld [vmem:[%s2 + $0x8] sm:$0xf]
  %v185 = vld [vmem:[%s2 + $0xc] sm:$0xf]
  %v186 = vld [vmem:[%s4] sm:$0x1]
  %v188 = vperm.slane %v186, 0
  %v194 = vunpack.c.l.b16 %v182
  %v195 = vunpack.c.l.b16 %v183
  %v196 = vunpack.c.l.b16 %v184
  %v197 = vunpack.c.l.b16 %v185
  %v198 = vpack.c.b16 %v195, %v194
  %v199 = vpack.c.b16 %v197, %v196
  %vm202 = vcmask 261120
  %v204 = vsel %vm202, %v178, 0
  %v207 = vsel %vm202, %v179, 0
  %v210 = vsel %vm202, %v180, 0
  %v213 = vsel %vm202, %v181, 0
  %215 = vmatpush.bf16.msra.mxu0 0
  %216 = vmatpush.bf16.msra.mxu0 0
  %217 = vmatpush.bf16.msra.mxu0 0
  %218 = vmatpush.bf16.msra.mxu0 0
  %219 = vmatpush.bf16.msra.mxu0 0
  %220 = vmatpush.bf16.msra.mxu0 0
  %221 = vmatpush.bf16.msra.mxu0 %v199
  %222 = vmatpush.bf16.msra.mxu0 %v198
  %223 = vmatmul.bf16.gmra.mxu0 %v204
  %v224 = vpop.f32.mrf.mxu0
  %v225 = vadd.f32 %v188, %v224
  %v226 = vpop.f32.mrf.mxu0
  %v227 = vadd.f32 %v188, %v226
  %228 = vmatmul.bf16.gmra.mxu0 %v207
  %v229 = vpop.f32.mrf.mxu0
  %v230 = vadd.f32 %v188, %v229
  %v231 = vpop.f32.mrf.mxu0
  %v232 = vadd.f32 %v188, %v231
  %233 = vmatmul.bf16.gmra.mxu0 %v210
  %v234 = vpop.f32.mrf.mxu0
  %v235 = vadd.f32 %v188, %v234
  %v236 = vpop.f32.mrf.mxu0
  %v237 = vadd.f32 %v188, %v236
  %238 = vmatmul.bf16.gmra.mxu0 %v213
  %v239 = vpop.f32.mrf.mxu0
  %v240 = vadd.f32 %v188, %v239
  %v241 = vpop.f32.mrf.mxu0
  %v242 = vadd.f32 %v188, %v241
  %243 = vdwg.mxu0
  %244 = vst [vmem:[#allocation2] sm:$0xff] %v225
  %245 = vst [vmem:[#allocation2 + $0x8] sm:$0xff] %v227
  %246 = vst [vmem:[#allocation2 + $0x10] sm:$0xff] %v230
  %247 = vst [vmem:[#allocation2 + $0x18] sm:$0xff] %v232
  %248 = vst [vmem:[#allocation2 + $0x20] sm:$0xff] %v235
  %249 = vst [vmem:[#allocation2 + $0x28] sm:$0xff] %v237
  %250 = vst [vmem:[#allocation2 + $0x30] sm:$0xff] %v240
  %251 = vst [vmem:[#allocation2 + $0x38] sm:$0xff] %v242
  %v252 = vld [vmem:[%s3] sm:$0xff]
  %v253 = vld [vmem:[%s3 + $0x8] sm:$0xff]
  %v254 = vld [vmem:[%s3 + $0x10] sm:$0xff]
  %v255 = vld [vmem:[%s3 + $0x18] sm:$0xff]
  %v256 = vld [vmem:[#allocation2] sm:$0xff]
  %v258 = vsel %vm202, 0.0, 0
  %260 = vmatpush.msra.mxu0 0.0
  %261 = vmatpush.msra.mxu0 0.0
  %262 = vmatpush.msra.mxu0 0.0
  %263 = vmatpush.msra.mxu0 0.0
  %264 = vmatpush.msra.mxu0 0.0
  %265 = vmatpush.msra.mxu0 0.0
  %266 = vmatpush.msra.mxu0 0.0
  %267 = vmatpush.msra.mxu0 0.0
  %268 = vmatpush.msra.mxu0 0.0
  %269 = vmatpush.msra.mxu0 0.0
  %270 = vmatpush.msra.mxu0 0.0
  %271 = vmatpush.msra.mxu0 0.0
  %272 = vmatpush.msra.mxu0 %v255
  %273 = vmatpush.msra.mxu0 %v254
  %274 = vmatpush.msra.mxu0 %v253
  %275 = vmatpush.msra.mxu0 %v252
  %276 = vmatmul.f32.gmra.mxu0 %v258
  %v277 = vpop.f32.mrf.mxu0
  %v278 = vadd.f32 0.0, %v277
  %279 = vdwg.mxu0
  %v280 = vadd.f32 %v256, %v278
  %v281 = vxor.u32 %v280, 2147483648
  %v282 = vmul.f32 %v281, 1.442695
  %v283 = vpow.pop %v282
  %v284 = vadd.f32 %v283, 1.0
  %v285 = vrcp.pop %v284
  %v286 = vmul.f32 %v284, %v285
  %v287 = vsub.f32 1.0, %v286
  %v288 = vmul.f32 %v285, %v287
  %v289 = vadd.f32 %v285, %v288
  %vm290 = vweird.f32 %v284
  %vm291 = vweird.f32 %v285
  %vm292 = vmor %vm290, %vm291
  %v293 = vsel %vm292, %v285, %v289
  %v294 = vand.u32 2147483647, %v284
  %vm295 = vcmp.eq.f32.partialorder %v294, 8.507059e+37
  %v296 = vand.u32 %v284, 2147483648
  %v297 = vor.u32 1.1754944e-38, %v296
  %v298 = vsel %vm295, %v297, %v293
  %v299 = vmul.f32 1.0, %v298
  %v300 = vtanh.pop %v280
  %v301 = vmul.f32 %v299, 0.0
  %303 = vrot.lane.b32.xlu0 %v300, 64
  %v304 = vpop.permute.xlu0 %303
  %v306 = vmul.f32 %v299, %v304
  %308 = vrot.lane.b32.xlu0 %v306, 32
  %v309 = vpop.permute.xlu0 %308
  %v311 = vadd.f32 %v301, %v309
  %v312 = vtanh.pop %v311
  %314 = vrot.lane.b32.xlu0 %v312, 64
  %v315 = vpop.permute.xlu0 %314
  %v317 = vmul.f32 %v299, %v315
  %319 = vrot.lane.b32.xlu0 %v317, 32
  %v320 = vpop.permute.xlu0 %319
  %322 = vst.msk [vmem:[#allocation3] sm:$0xff] %vm202, %v320
  %s323 = scalar_lea.vmem [#allocation2], 8
  %v324 = vld [vmem:[%s323] sm:$0xff]
  %v325 = vsel %vm202, %v320, 0
  %327 = vmatpush.msra.mxu0 0.0
  %328 = vmatpush.msra.mxu0 0.0
  %329 = vmatpush.msra.mxu0 0.0
  %330 = vmatpush.msra.mxu0 0.0
  %331 = vmatpush.msra.mxu0 0.0
  %332 = vmatpush.msra.mxu0 0.0
  %333 = vmatpush.msra.mxu0 0.0
  %334 = vmatpush.msra.mxu0 0.0
  %335 = vmatpush.msra.mxu0 0.0
  %336 = vmatpush.msra.mxu0 0.0
  %337 = vmatpush.msra.mxu0 0.0
  %338 = vmatpush.msra.mxu0 0.0
  %339 = vmatpush.msra.mxu0 %v255
  %340 = vmatpush.msra.mxu0 %v254
  %341 = vmatpush.msra.mxu0 %v253
  %342 = vmatpush.msra.mxu0 %v252
  %343 = vmatmul.f32.gmra.mxu0 %v325
  %v344 = vpop.f32.mrf.mxu0
  %v345 = vadd.f32 0.0, %v344
  %346 = vdwg.mxu0
  %v347 = vadd.f32 %v324, %v345
  %v348 = vxor.u32 %v347, 2147483648
  %v349 = vmul.f32 %v348, 1.442695
  %v350 = vpow.pop %v349
  %v351 = vadd.f32 %v350, 1.0
  %v352 = vrcp.pop %v351
  %v353 = vmul.f32 %v351, %v352
  %v354 = vsub.f32 1.0, %v353
  %v355 = vmul.f32 %v352, %v354
  %v356 = vadd.f32 %v352, %v355
  %vm357 = vweird.f32 %v351
  %vm358 = vweird.f32 %v352
  %vm359 = vmor %vm357, %vm358
  %v360 = vsel %vm359, %v352, %v356
  %v361 = vand.u32 2147483647, %v351
  %vm362 = vcmp.eq.f32.partialorder %v361, 8.507059e+37
  %v363 = vand.u32 %v351, 2147483648
  %v364 = vor.u32 1.1754944e-38, %v363
  %v365 = vsel %vm362, %v364, %v360
  %v366 = vmul.f32 1.0, %v365
  %v367 = vtanh.pop %v347
  %v368 = vmul.f32 %v366, %v311
  %370 = vrot.lane.b32.xlu0 %v367, 64
  %v371 = vpop.permute.xlu0 %370
  %v373 = vmul.f32 %v366, %v371
  %375 = vrot.lane.b32.xlu0 %v373, 32
  %v376 = vpop.permute.xlu0 %375
  %v378 = vadd.f32 %v368, %v376
  %v379 = vtanh.pop %v378
  %381 = vrot.lane.b32.xlu0 %v379, 64
  %v382 = vpop.permute.xlu0 %381
  %v384 = vmul.f32 %v366, %v382
  %386 = vrot.lane.b32.xlu0 %v384, 32
  %v387 = vpop.permute.xlu0 %386
  %s389 = scalar_lea.vmem [#allocation3], 8
  %390 = vst.msk [vmem:[%s389] sm:$0xff] %vm202, %v387
  %s391 = scalar_lea.vmem [#allocation2], 16
  %v392 = vld [vmem:[%s391] sm:$0xff]
  %v393 = vsel %vm202, %v387, 0
  %395 = vmatpush.msra.mxu0 0.0
  %396 = vmatpush.msra.mxu0 0.0
  %397 = vmatpush.msra.mxu0 0.0
  %398 = vmatpush.msra.mxu0 0.0
  %399 = vmatpush.msra.mxu0 0.0
  %400 = vmatpush.msra.mxu0 0.0
  %401 = vmatpush.msra.mxu0 0.0
  %402 = vmatpush.msra.mxu0 0.0
  %403 = vmatpush.msra.mxu0 0.0
  %404 = vmatpush.msra.mxu0 0.0
  %405 = vmatpush.msra.mxu0 0.0
  %406 = vmatpush.msra.mxu0 0.0
  %407 = vmatpush.msra.mxu0 %v255
  %408 = vmatpush.msra.mxu0 %v254
  %409 = vmatpush.msra.mxu0 %v253
  %410 = vmatpush.msra.mxu0 %v252
  %411 = vmatmul.f32.gmra.mxu0 %v393
  %v412 = vpop.f32.mrf.mxu0
  %v413 = vadd.f32 0.0, %v412
  %414 = vdwg.mxu0
  %v415 = vadd.f32 %v392, %v413
  %v416 = vxor.u32 %v415, 2147483648
  %v417 = vmul.f32 %v416, 1.442695
  %v418 = vpow.pop %v417
  %v419 = vadd.f32 %v418, 1.0
  %v420 = vrcp.pop %v419
  %v421 = vmul.f32 %v419, %v420
  %v422 = vsub.f32 1.0, %v421
  %v423 = vmul.f32 %v420, %v422
  %v424 = vadd.f32 %v420, %v423
  %vm425 = vweird.f32 %v419
  %vm426 = vweird.f32 %v420
  %vm427 = vmor %vm425, %vm426
  %v428 = vsel %vm427, %v420, %v424
  %v429 = vand.u32 2147483647, %v419
  %vm430 = vcmp.eq.f32.partialorder %v429, 8.507059e+37
  %v431 = vand.u32 %v419, 2147483648
  %v432 = vor.u32 1.1754944e-38, %v431
  %v433 = vsel %vm430, %v432, %v428
  %v434 = vmul.f32 1.0, %v433
  %v435 = vtanh.pop %v415
  %v436 = vmul.f32 %v434, %v378
  %438 = vrot.lane.b32.xlu0 %v435, 64
  %v439 = vpop.permute.xlu0 %438
  %v441 = vmul.f32 %v434, %v439
  %443 = vrot.lane.b32.xlu0 %v441, 32
  %v444 = vpop.permute.xlu0 %443
  %v446 = vadd.f32 %v436, %v444
  %v447 = vtanh.pop %v446
  %449 = vrot.lane.b32.xlu0 %v447, 64
  %v450 = vpop.permute.xlu0 %449
  %v452 = vmul.f32 %v434, %v450
  %454 = vrot.lane.b32.xlu0 %v452, 32
  %v455 = vpop.permute.xlu0 %454
  %s457 = scalar_lea.vmem [#allocation3], 16
  %458 = vst.msk [vmem:[%s457] sm:$0xff] %vm202, %v455
  %s459 = scalar_lea.vmem [#allocation2], 24
  %v460 = vld [vmem:[%s459] sm:$0xff]
  %v461 = vsel %vm202, %v455, 0
  %463 = vmatpush.msra.mxu0 0.0
  %464 = vmatpush.msra.mxu0 0.0
  %465 = vmatpush.msra.mxu0 0.0
  %466 = vmatpush.msra.mxu0 0.0
  %467 = vmatpush.msra.mxu0 0.0
  %468 = vmatpush.msra.mxu0 0.0
  %469 = vmatpush.msra.mxu0 0.0
  %470 = vmatpush.msra.mxu0 0.0
  %471 = vmatpush.msra.mxu0 0.0
  %472 = vmatpush.msra.mxu0 0.0
  %473 = vmatpush.msra.mxu0 0.0
  %474 = vmatpush.msra.mxu0 0.0
  %475 = vmatpush.msra.mxu0 %v255
  %476 = vmatpush.msra.mxu0 %v254
  %477 = vmatpush.msra.mxu0 %v253
  %478 = vmatpush.msra.mxu0 %v252
  %479 = vmatmul.f32.gmra.mxu0 %v461
  %v480 = vpop.f32.mrf.mxu0
  %v481 = vadd.f32 0.0, %v480
  %482 = vdwg.mxu0
  %v483 = vadd.f32 %v460, %v481
  %v484 = vxor.u32 %v483, 2147483648
  %v485 = vmul.f32 %v484, 1.442695
  %v486 = vpow.pop %v485
  %v487 = vadd.f32 %v486, 1.0
  %v488 = vrcp.pop %v487
  %v489 = vmul.f32 %v487, %v488
  %v490 = vsub.f32 1.0, %v489
  %v491 = vmul.f32 %v488, %v490
  %v492 = vadd.f32 %v488, %v491
  %vm493 = vweird.f32 %v487
  %vm494 = vweird.f32 %v488
  %vm495 = vmor %vm493, %vm494
  %v496 = vsel %vm495, %v488, %v492
  %v497 = vand.u32 2147483647, %v487
  %vm498 = vcmp.eq.f32.partialorder %v497, 8.507059e+37
  %v499 = vand.u32 %v487, 2147483648
  %v500 = vor.u32 1.1754944e-38, %v499
  %v501 = vsel %vm498, %v500, %v496
  %v502 = vmul.f32 1.0, %v501
  %v503 = vtanh.pop %v483
  %v504 = vmul.f32 %v502, %v446
  %506 = vrot.lane.b32.xlu0 %v503, 64
  %v507 = vpop.permute.xlu0 %506
  %v509 = vmul.f32 %v502, %v507
  %511 = vrot.lane.b32.xlu0 %v509, 32
  %v512 = vpop.permute.xlu0 %511
  %v514 = vadd.f32 %v504, %v512
  %v515 = vtanh.pop %v514
  %517 = vrot.lane.b32.xlu0 %v515, 64
  %v518 = vpop.permute.xlu0 %517
  %v520 = vmul.f32 %v502, %v518
  %522 = vrot.lane.b32.xlu0 %v520, 32
  %v523 = vpop.permute.xlu0 %522
  %s525 = scalar_lea.vmem [#allocation3], 24
  %526 = vst.msk [vmem:[%s525] sm:$0xff] %vm202, %v523
  %s527 = scalar_lea.vmem [#allocation2], 32
  %v528 = vld [vmem:[%s527] sm:$0xff]
  %v529 = vsel %vm202, %v523, 0
  %531 = vmatpush.msra.mxu0 0.0
  %532 = vmatpush.msra.mxu0 0.0
  %533 = vmatpush.msra.mxu0 0.0
  %534 = vmatpush.msra.mxu0 0.0
  %535 = vmatpush.msra.mxu0 0.0
  %536 = vmatpush.msra.mxu0 0.0
  %537 = vmatpush.msra.mxu0 0.0
  %538 = vmatpush.msra.mxu0 0.0
  %539 = vmatpush.msra.mxu0 0.0
  %540 = vmatpush.msra.mxu0 0.0
  %541 = vmatpush.msra.mxu0 0.0
  %542 = vmatpush.msra.mxu0 0.0
  %543 = vmatpush.msra.mxu0 %v255
  %544 = vmatpush.msra.mxu0 %v254
  %545 = vmatpush.msra.mxu0 %v253
  %546 = vmatpush.msra.mxu0 %v252
  %547 = vmatmul.f32.gmra.mxu0 %v529
  %v548 = vpop.f32.mrf.mxu0
  %v549 = vadd.f32 0.0, %v548
  %550 = vdwg.mxu0
  %v551 = vadd.f32 %v528, %v549
  %v552 = vxor.u32 %v551, 2147483648
  %v553 = vmul.f32 %v552, 1.442695
  %v554 = vpow.pop %v553
  %v555 = vadd.f32 %v554, 1.0
  %v556 = vrcp.pop %v555
  %v557 = vmul.f32 %v555, %v556
  %v558 = vsub.f32 1.0, %v557
  %v559 = vmul.f32 %v556, %v558
  %v560 = vadd.f32 %v556, %v559
  %vm561 = vweird.f32 %v555
  %vm562 = vweird.f32 %v556
  %vm563 = vmor %vm561, %vm562
  %v564 = vsel %vm563, %v556, %v560
  %v565 = vand.u32 2147483647, %v555
  %vm566 = vcmp.eq.f32.partialorder %v565, 8.507059e+37
  %v567 = vand.u32 %v555, 2147483648
  %v568 = vor.u32 1.1754944e-38, %v567
  %v569 = vsel %vm566, %v568, %v564
  %v570 = vmul.f32 1.0, %v569
  %v571 = vtanh.pop %v551
  %v572 = vmul.f32 %v570, %v514
  %574 = vrot.lane.b32.xlu0 %v571, 64
  %v575 = vpop.permute.xlu0 %574
  %v577 = vmul.f32 %v570, %v575
  %579 = vrot.lane.b32.xlu0 %v577, 32
  %v580 = vpop.permute.xlu0 %579
  %v582 = vadd.f32 %v572, %v580
  %v583 = vtanh.pop %v582
  %585 = vrot.lane.b32.xlu0 %v583, 64
  %v586 = vpop.permute.xlu0 %585
  %v588 = vmul.f32 %v570, %v586
  %590 = vrot.lane.b32.xlu0 %v588, 32
  %v591 = vpop.permute.xlu0 %590
  %s593 = scalar_lea.vmem [#allocation3], 32
  %594 = vst.msk [vmem:[%s593] sm:$0xff] %vm202, %v591
  %s595 = scalar_lea.vmem [#allocation2], 40
  %v596 = vld [vmem:[%s595] sm:$0xff]
  %v597 = vsel %vm202, %v591, 0
  %599 = vmatpush.msra.mxu0 0.0
  %600 = vmatpush.msra.mxu0 0.0
  %601 = vmatpush.msra.mxu0 0.0
  %602 = vmatpush.msra.mxu0 0.0
  %603 = vmatpush.msra.mxu0 0.0
  %604 = vmatpush.msra.mxu0 0.0
  %605 = vmatpush.msra.mxu0 0.0
  %606 = vmatpush.msra.mxu0 0.0
  %607 = vmatpush.msra.mxu0 0.0
  %608 = vmatpush.msra.mxu0 0.0
  %609 = vmatpush.msra.mxu0 0.0
  %610 = vmatpush.msra.mxu0 0.0
  %611 = vmatpush.msra.mxu0 %v255
  %612 = vmatpush.msra.mxu0 %v254
  %613 = vmatpush.msra.mxu0 %v253
  %614 = vmatpush.msra.mxu0 %v252
  %615 = vmatmul.f32.gmra.mxu0 %v597
  %v616 = vpop.f32.mrf.mxu0
  %v617 = vadd.f32 0.0, %v616
  %618 = vdwg.mxu0
  %v619 = vadd.f32 %v596, %v617
  %v620 = vxor.u32 %v619, 2147483648
  %v621 = vmul.f32 %v620, 1.442695
  %v622 = vpow.pop %v621
  %v623 = vadd.f32 %v622, 1.0
  %v624 = vrcp.pop %v623
  %v625 = vmul.f32 %v623, %v624
  %v626 = vsub.f32 1.0, %v625
  %v627 = vmul.f32 %v624, %v626
  %v628 = vadd.f32 %v624, %v627
  %vm629 = vweird.f32 %v623
  %vm630 = vweird.f32 %v624
  %vm631 = vmor %vm629, %vm630
  %v632 = vsel %vm631, %v624, %v628
  %v633 = vand.u32 2147483647, %v623
  %vm634 = vcmp.eq.f32.partialorder %v633, 8.507059e+37
  %v635 = vand.u32 %v623, 2147483648
  %v636 = vor.u32 1.1754944e-38, %v635
  %v637 = vsel %vm634, %v636, %v632
  %v638 = vmul.f32 1.0, %v637
  %v639 = vtanh.pop %v619
  %v640 = vmul.f32 %v638, %v582
  %642 = vrot.lane.b32.xlu0 %v639, 64
  %v643 = vpop.permute.xlu0 %642
  %v645 = vmul.f32 %v638, %v643
  %647 = vrot.lane.b32.xlu0 %v645, 32
  %v648 = vpop.permute.xlu0 %647
  %v650 = vadd.f32 %v640, %v648
  %v651 = vtanh.pop %v650
  %653 = vrot.lane.b32.xlu0 %v651, 64
  %v654 = vpop.permute.xlu0 %653
  %v656 = vmul.f32 %v638, %v654
  %658 = vrot.lane.b32.xlu0 %v656, 32
  %v659 = vpop.permute.xlu0 %658
  %s661 = scalar_lea.vmem [#allocation3], 40
  %662 = vst.msk [vmem:[%s661] sm:$0xff] %vm202, %v659
  %s663 = scalar_lea.vmem [#allocation2], 48
  %v664 = vld [vmem:[%s663] sm:$0xff]
  %v665 = vsel %vm202, %v659, 0
  %667 = vmatpush.msra.mxu0 0.0
  %668 = vmatpush.msra.mxu0 0.0
  %669 = vmatpush.msra.mxu0 0.0
  %670 = vmatpush.msra.mxu0 0.0
  %671 = vmatpush.msra.mxu0 0.0
  %672 = vmatpush.msra.mxu0 0.0
  %673 = vmatpush.msra.mxu0 0.0
  %674 = vmatpush.msra.mxu0 0.0
  %675 = vmatpush.msra.mxu0 0.0
  %676 = vmatpush.msra.mxu0 0.0
  %677 = vmatpush.msra.mxu0 0.0
  %678 = vmatpush.msra.mxu0 0.0
  %679 = vmatpush.msra.mxu0 %v255
  %680 = vmatpush.msra.mxu0 %v254
  %681 = vmatpush.msra.mxu0 %v253
  %682 = vmatpush.msra.mxu0 %v252
  %683 = vmatmul.f32.gmra.mxu0 %v665
  %v684 = vpop.f32.mrf.mxu0
  %v685 = vadd.f32 0.0, %v684
  %686 = vdwg.mxu0
  %v687 = vadd.f32 %v664, %v685
  %v688 = vxor.u32 %v687, 2147483648
  %v689 = vmul.f32 %v688, 1.442695
  %v690 = vpow.pop %v689
  %v691 = vadd.f32 %v690, 1.0
  %v692 = vrcp.pop %v691
  %v693 = vmul.f32 %v691, %v692
  %v694 = vsub.f32 1.0, %v693
  %v695 = vmul.f32 %v692, %v694
  %v696 = vadd.f32 %v692, %v695
  %vm697 = vweird.f32 %v691
  %vm698 = vweird.f32 %v692
  %vm699 = vmor %vm697, %vm698
  %v700 = vsel %vm699, %v692, %v696
  %v701 = vand.u32 2147483647, %v691
  %vm702 = vcmp.eq.f32.partialorder %v701, 8.507059e+37
  %v703 = vand.u32 %v691, 2147483648
  %v704 = vor.u32 1.1754944e-38, %v703
  %v705 = vsel %vm702, %v704, %v700
  %v706 = vmul.f32 1.0, %v705
  %v707 = vtanh.pop %v687
  %v708 = vmul.f32 %v706, %v650
  %710 = vrot.lane.b32.xlu0 %v707, 64
  %v711 = vpop.permute.xlu0 %710
  %v713 = vmul.f32 %v706, %v711
  %715 = vrot.lane.b32.xlu0 %v713, 32
  %v716 = vpop.permute.xlu0 %715
  %v718 = vadd.f32 %v708, %v716
  %v719 = vtanh.pop %v718
  %721 = vrot.lane.b32.xlu0 %v719, 64
  %v722 = vpop.permute.xlu0 %721
  %v724 = vmul.f32 %v706, %v722
  %726 = vrot.lane.b32.xlu0 %v724, 32
  %v727 = vpop.permute.xlu0 %726
  %s729 = scalar_lea.vmem [#allocation3], 48
  %730 = vst.msk [vmem:[%s729] sm:$0xff] %vm202, %v727
  %s731 = scalar_lea.vmem [#allocation2], 56
  %v732 = vld [vmem:[%s731] sm:$0xff]
  %v733 = vsel %vm202, %v727, 0
  %735 = vmatpush.msra.mxu0 0.0
  %736 = vmatpush.msra.mxu0 0.0
  %737 = vmatpush.msra.mxu0 0.0
  %738 = vmatpush.msra.mxu0 0.0
  %739 = vmatpush.msra.mxu0 0.0
  %740 = vmatpush.msra.mxu0 0.0
  %741 = vmatpush.msra.mxu0 0.0
  %742 = vmatpush.msra.mxu0 0.0
  %743 = vmatpush.msra.mxu0 0.0
  %744 = vmatpush.msra.mxu0 0.0
  %745 = vmatpush.msra.mxu0 0.0
  %746 = vmatpush.msra.mxu0 0.0
  %747 = vmatpush.msra.mxu0 %v255
  %748 = vmatpush.msra.mxu0 %v254
  %749 = vmatpush.msra.mxu0 %v253
  %750 = vmatpush.msra.mxu0 %v252
  %751 = vmatmul.f32.gmra.mxu0 %v733
  %v752 = vpop.f32.mrf.mxu0
  %v753 = vadd.f32 0.0, %v752
  %754 = vdwg.mxu0
  %v755 = vadd.f32 %v732, %v753
  %v756 = vxor.u32 %v755, 2147483648
  %v757 = vmul.f32 %v756, 1.442695
  %v758 = vpow.pop %v757
  %v759 = vadd.f32 %v758, 1.0
  %v760 = vrcp.pop %v759
  %v761 = vmul.f32 %v759, %v760
  %v762 = vsub.f32 1.0, %v761
  %v763 = vmul.f32 %v760, %v762
  %v764 = vadd.f32 %v760, %v763
  %vm765 = vweird.f32 %v759
  %vm766 = vweird.f32 %v760
  %vm767 = vmor %vm765, %vm766
  %v768 = vsel %vm767, %v760, %v764
  %v769 = vand.u32 2147483647, %v759
  %vm770 = vcmp.eq.f32.partialorder %v769, 8.507059e+37
  %v771 = vand.u32 %v759, 2147483648
  %v772 = vor.u32 1.1754944e-38, %v771
  %v773 = vsel %vm770, %v772, %v768
  %v774 = vmul.f32 1.0, %v773
  %v775 = vtanh.pop %v755
  %v776 = vmul.f32 %v774, %v718
  %778 = vrot.lane.b32.xlu0 %v775, 64
  %v779 = vpop.permute.xlu0 %778
  %v781 = vmul.f32 %v774, %v779
  %783 = vrot.lane.b32.xlu0 %v781, 32
  %v784 = vpop.permute.xlu0 %783
  %v786 = vadd.f32 %v776, %v784
  %v787 = vtanh.pop %v786
  %789 = vrot.lane.b32.xlu0 %v787, 64
  %v790 = vpop.permute.xlu0 %789
  %v792 = vmul.f32 %v774, %v790
  %794 = vrot.lane.b32.xlu0 %v792, 32
  %v795 = vpop.permute.xlu0 %794
  %s797 = scalar_lea.vmem [#allocation3], 56
  %798 = vst.msk [vmem:[%s797] sm:$0xff] %vm202, %v795
  %v799 = vld [vmem:[#allocation3] sm:$0xff]
  %v800 = vld [vmem:[#allocation3 + $0x8] sm:$0xff]
  %v801 = vld [vmem:[#allocation3 + $0x10] sm:$0xff]
  %v802 = vld [vmem:[#allocation3 + $0x18] sm:$0xff]
  %v803 = vld [vmem:[#allocation3 + $0x20] sm:$0xff]
  %v804 = vld [vmem:[#allocation3 + $0x28] sm:$0xff]
  %v805 = vld [vmem:[#allocation3 + $0x30] sm:$0xff]
  %v806 = vld [vmem:[#allocation3 + $0x38] sm:$0xff]
  %v807 = vpack.c.bf16 %v800, %v799
  %v808 = vpack.c.bf16 %v802, %v801
  %v809 = vpack.c.bf16 %v804, %v803
  %v810 = vpack.c.bf16 %v806, %v805
  %v811 = vld [vmem:[%s5] sm:$0xf]
  %v812 = vld [vmem:[%s5 + $0x4] sm:$0xf]
  %v813 = vld [vmem:[%s5 + $0x8] sm:$0xf]
  %v814 = vld [vmem:[%s5 + $0xc] sm:$0xf]
  %v815 = vld [vmem:[%s7] sm:$0x1]
  %v817 = vperm.slane %v815, 0
  %v823 = vunpack.c.l.b16 %v811
  %v824 = vunpack.c.l.b16 %v812
  %v825 = vunpack.c.l.b16 %v813
  %v826 = vunpack.c.l.b16 %v814
  %v827 = vpack.c.b16 %v824, %v823
  %v828 = vpack.c.b16 %v826, %v825
  %v832 = vsel %vm202, %v807, 0
  %v835 = vsel %vm202, %v808, 0
  %v838 = vsel %vm202, %v809, 0
  %v841 = vsel %vm202, %v810, 0
  %843 = vmatpush.bf16.msra.mxu0 0
  %844 = vmatpush.bf16.msra.mxu0 0
  %845 = vmatpush.bf16.msra.mxu0 0
  %846 = vmatpush.bf16.msra.mxu0 0
  %847 = vmatpush.bf16.msra.mxu0 0
  %848 = vmatpush.bf16.msra.mxu0 0
  %849 = vmatpush.bf16.msra.mxu0 %v828
  %850 = vmatpush.bf16.msra.mxu0 %v827
  %851 = vmatmul.bf16.gmra.mxu0 %v832
  %v852 = vpop.f32.mrf.mxu0
  %v853 = vadd.f32 %v817, %v852
  %v854 = vpop.f32.mrf.mxu0
  %v855 = vadd.f32 %v817, %v854
  %856 = vmatmul.bf16.gmra.mxu0 %v835
  %v857 = vpop.f32.mrf.mxu0
  %v858 = vadd.f32 %v817, %v857
  %v859 = vpop.f32.mrf.mxu0
  %v860 = vadd.f32 %v817, %v859
  %861 = vmatmul.bf16.gmra.mxu0 %v838
  %v862 = vpop.f32.mrf.mxu0
  %v863 = vadd.f32 %v817, %v862
  %v864 = vpop.f32.mrf.mxu0
  %v865 = vadd.f32 %v817, %v864
  %866 = vmatmul.bf16.gmra.mxu0 %v841
  %v867 = vpop.f32.mrf.mxu0
  %v868 = vadd.f32 %v817, %v867
  %v869 = vpop.f32.mrf.mxu0
  %v870 = vadd.f32 %v817, %v869
  %871 = vdwg.mxu0
  %872 = vst [vmem:[#allocation2] sm:$0xff] %v853
  %873 = vst [vmem:[#allocation2 + $0x8] sm:$0xff] %v855
  %874 = vst [vmem:[#allocation2 + $0x10] sm:$0xff] %v858
  %875 = vst [vmem:[#allocation2 + $0x18] sm:$0xff] %v860
  %876 = vst [vmem:[#allocation2 + $0x20] sm:$0xff] %v863
  %877 = vst [vmem:[#allocation2 + $0x28] sm:$0xff] %v865
  %878 = vst [vmem:[#allocation2 + $0x30] sm:$0xff] %v868
  %879 = vst [vmem:[#allocation2 + $0x38] sm:$0xff] %v870
  %v880 = vld [vmem:[%s6] sm:$0xff]
  %v881 = vld [vmem:[%s6 + $0x8] sm:$0xff]
  %v882 = vld [vmem:[%s6 + $0x10] sm:$0xff]
  %v883 = vld [vmem:[%s6 + $0x18] sm:$0xff]
  %v884 = vld [vmem:[#allocation2] sm:$0xff]
  %885 = vmatpush.msra.mxu0 0.0
  %886 = vmatpush.msra.mxu0 0.0
  %887 = vmatpush.msra.mxu0 0.0
  %888 = vmatpush.msra.mxu0 0.0
  %889 = vmatpush.msra.mxu0 0.0
  %890 = vmatpush.msra.mxu0 0.0
  %891 = vmatpush.msra.mxu0 0.0
  %892 = vmatpush.msra.mxu0 0.0
  %893 = vmatpush.msra.mxu0 0.0
  %894 = vmatpush.msra.mxu0 0.0
  %895 = vmatpush.msra.mxu0 0.0
  %896 = vmatpush.msra.mxu0 0.0
  %897 = vmatpush.msra.mxu0 %v883
  %898 = vmatpush.msra.mxu0 %v882
  %899 = vmatpush.msra.mxu0 %v881
  %900 = vmatpush.msra.mxu0 %v880
  %901 = vmatmul.f32.gmra.mxu0 %v258
  %v902 = vpop.f32.mrf.mxu0
  %v903 = vadd.f32 0.0, %v902
  %904 = vdwg.mxu0
  %v905 = vadd.f32 %v884, %v903
  %v906 = vxor.u32 %v905, 2147483648
  %v907 = vmul.f32 %v906, 1.442695
  %v908 = vpow.pop %v907
  %v909 = vadd.f32 %v908, 1.0
  %v910 = vrcp.pop %v909
  %v911 = vmul.f32 %v909, %v910
  %v912 = vsub.f32 1.0, %v911
  %v913 = vmul.f32 %v910, %v912
  %v914 = vadd.f32 %v910, %v913
  %vm915 = vweird.f32 %v909
  %vm916 = vweird.f32 %v910
  %vm917 = vmor %vm915, %vm916
  %v918 = vsel %vm917, %v910, %v914
  %v919 = vand.u32 2147483647, %v909
  %vm920 = vcmp.eq.f32.partialorder %v919, 8.507059e+37
  %v921 = vand.u32 %v909, 2147483648
  %v922 = vor.u32 1.1754944e-38, %v921
  %v923 = vsel %vm920, %v922, %v918
  %v924 = vmul.f32 1.0, %v923
  %v925 = vtanh.pop %v905
  %v926 = vmul.f32 %v924, 0.0
  %928 = vrot.lane.b32.xlu0 %v925, 64
  %v929 = vpop.permute.xlu0 %928
  %v931 = vmul.f32 %v924, %v929
  %933 = vrot.lane.b32.xlu0 %v931, 32
  %v934 = vpop.permute.xlu0 %933
  %v936 = vadd.f32 %v926, %v934
  %v937 = vtanh.pop %v936
  %939 = vrot.lane.b32.xlu0 %v937, 64
  %v940 = vpop.permute.xlu0 %939
  %v942 = vmul.f32 %v924, %v940
  %944 = vrot.lane.b32.xlu0 %v942, 32
  %v945 = vpop.permute.xlu0 %944
  %947 = vst.msk [vmem:[#allocation4] sm:$0xff] %vm202, %v945
  %v948 = vld [vmem:[%s323] sm:$0xff]
  %v949 = vsel %vm202, %v945, 0
  %951 = vmatpush.msra.mxu0 0.0
  %952 = vmatpush.msra.mxu0 0.0
  %953 = vmatpush.msra.mxu0 0.0
  %954 = vmatpush.msra.mxu0 0.0
  %955 = vmatpush.msra.mxu0 0.0
  %956 = vmatpush.msra.mxu0 0.0
  %957 = vmatpush.msra.mxu0 0.0
  %958 = vmatpush.msra.mxu0 0.0
  %959 = vmatpush.msra.mxu0 0.0
  %960 = vmatpush.msra.mxu0 0.0
  %961 = vmatpush.msra.mxu0 0.0
  %962 = vmatpush.msra.mxu0 0.0
  %963 = vmatpush.msra.mxu0 %v883
  %964 = vmatpush.msra.mxu0 %v882
  %965 = vmatpush.msra.mxu0 %v881
  %966 = vmatpush.msra.mxu0 %v880
  %967 = vmatmul.f32.gmra.mxu0 %v949
  %v968 = vpop.f32.mrf.mxu0
  %v969 = vadd.f32 0.0, %v968
  %970 = vdwg.mxu0
  %v971 = vadd.f32 %v948, %v969
  %v972 = vxor.u32 %v971, 2147483648
  %v973 = vmul.f32 %v972, 1.442695
  %v974 = vpow.pop %v973
  %v975 = vadd.f32 %v974, 1.0
  %v976 = vrcp.pop %v975
  %v977 = vmul.f32 %v975, %v976
  %v978 = vsub.f32 1.0, %v977
  %v979 = vmul.f32 %v976, %v978
  %v980 = vadd.f32 %v976, %v979
  %vm981 = vweird.f32 %v975
  %vm982 = vweird.f32 %v976
  %vm983 = vmor %vm981, %vm982
  %v984 = vsel %vm983, %v976, %v980
  %v985 = vand.u32 2147483647, %v975
  %vm986 = vcmp.eq.f32.partialorder %v985, 8.507059e+37
  %v987 = vand.u32 %v975, 2147483648
  %v988 = vor.u32 1.1754944e-38, %v987
  %v989 = vsel %vm986, %v988, %v984
  %v990 = vmul.f32 1.0, %v989
  %v991 = vtanh.pop %v971
  %v992 = vmul.f32 %v990, %v936
  %994 = vrot.lane.b32.xlu0 %v991, 64
  %v995 = vpop.permute.xlu0 %994
  %v997 = vmul.f32 %v990, %v995
  %999 = vrot.lane.b32.xlu0 %v997, 32
  %v1000 = vpop.permute.xlu0 %999
  %v1002 = vadd.f32 %v992, %v1000
  %v1003 = vtanh.pop %v1002
  %1005 = vrot.lane.b32.xlu0 %v1003, 64
  %v1006 = vpop.permute.xlu0 %1005
  %v1008 = vmul.f32 %v990, %v1006
  %1010 = vrot.lane.b32.xlu0 %v1008, 32
  %v1011 = vpop.permute.xlu0 %1010
  %s1013 = scalar_lea.vmem [#allocation4], 8
  %1014 = vst.msk [vmem:[%s1013] sm:$0xff] %vm202, %v1011
  %v1015 = vld [vmem:[%s391] sm:$0xff]
  %v1016 = vsel %vm202, %v1011, 0
  %1018 = vmatpush.msra.mxu0 0.0
  %1019 = vmatpush.msra.mxu0 0.0
  %1020 = vmatpush.msra.mxu0 0.0
  %1021 = vmatpush.msra.mxu0 0.0
  %1022 = vmatpush.msra.mxu0 0.0
  %1023 = vmatpush.msra.mxu0 0.0
  %1024 = vmatpush.msra.mxu0 0.0
  %1025 = vmatpush.msra.mxu0 0.0
  %1026 = vmatpush.msra.mxu0 0.0
  %1027 = vmatpush.msra.mxu0 0.0
  %1028 = vmatpush.msra.mxu0 0.0
  %1029 = vmatpush.msra.mxu0 0.0
  %1030 = vmatpush.msra.mxu0 %v883
  %1031 = vmatpush.msra.mxu0 %v882
  %1032 = vmatpush.msra.mxu0 %v881
  %1033 = vmatpush.msra.mxu0 %v880
  %1034 = vmatmul.f32.gmra.mxu0 %v1016
  %v1035 = vpop.f32.mrf.mxu0
  %v1036 = vadd.f32 0.0, %v1035
  %1037 = vdwg.mxu0
  %v1038 = vadd.f32 %v1015, %v1036
  %v1039 = vxor.u32 %v1038, 2147483648
  %v1040 = vmul.f32 %v1039, 1.442695
  %v1041 = vpow.pop %v1040
  %v1042 = vadd.f32 %v1041, 1.0
  %v1043 = vrcp.pop %v1042
  %v1044 = vmul.f32 %v1042, %v1043
  %v1045 = vsub.f32 1.0, %v1044
  %v1046 = vmul.f32 %v1043, %v1045
  %v1047 = vadd.f32 %v1043, %v1046
  %vm1048 = vweird.f32 %v1042
  %vm1049 = vweird.f32 %v1043
  %vm1050 = vmor %vm1048, %vm1049
  %v1051 = vsel %vm1050, %v1043, %v1047
  %v1052 = vand.u32 2147483647, %v1042
  %vm1053 = vcmp.eq.f32.partialorder %v1052, 8.507059e+37
  %v1054 = vand.u32 %v1042, 2147483648
  %v1055 = vor.u32 1.1754944e-38, %v1054
  %v1056 = vsel %vm1053, %v1055, %v1051
  %v1057 = vmul.f32 1.0, %v1056
  %v1058 = vtanh.pop %v1038
  %v1059 = vmul.f32 %v1057, %v1002
  %1061 = vrot.lane.b32.xlu0 %v1058, 64
  %v1062 = vpop.permute.xlu0 %1061
  %v1064 = vmul.f32 %v1057, %v1062
  %1066 = vrot.lane.b32.xlu0 %v1064, 32
  %v1067 = vpop.permute.xlu0 %1066
  %v1069 = vadd.f32 %v1059, %v1067
  %v1070 = vtanh.pop %v1069
  %1072 = vrot.lane.b32.xlu0 %v1070, 64
  %v1073 = vpop.permute.xlu0 %1072
  %v1075 = vmul.f32 %v1057, %v1073
  %1077 = vrot.lane.b32.xlu0 %v1075, 32
  %v1078 = vpop.permute.xlu0 %1077
  %s1080 = scalar_lea.vmem [#allocation4], 16
  %1081 = vst.msk [vmem:[%s1080] sm:$0xff] %vm202, %v1078
  %v1082 = vld [vmem:[%s459] sm:$0xff]
  %v1083 = vsel %vm202, %v1078, 0
  %1085 = vmatpush.msra.mxu0 0.0
  %1086 = vmatpush.msra.mxu0 0.0
  %1087 = vmatpush.msra.mxu0 0.0
  %1088 = vmatpush.msra.mxu0 0.0
  %1089 = vmatpush.msra.mxu0 0.0
  %1090 = vmatpush.msra.mxu0 0.0
  %1091 = vmatpush.msra.mxu0 0.0
  %1092 = vmatpush.msra.mxu0 0.0
  %1093 = vmatpush.msra.mxu0 0.0
  %1094 = vmatpush.msra.mxu0 0.0
  %1095 = vmatpush.msra.mxu0 0.0
  %1096 = vmatpush.msra.mxu0 0.0
  %1097 = vmatpush.msra.mxu0 %v883
  %1098 = vmatpush.msra.mxu0 %v882
  %1099 = vmatpush.msra.mxu0 %v881
  %1100 = vmatpush.msra.mxu0 %v880
  %1101 = vmatmul.f32.gmra.mxu0 %v1083
  %v1102 = vpop.f32.mrf.mxu0
  %v1103 = vadd.f32 0.0, %v1102
  %1104 = vdwg.mxu0
  %v1105 = vadd.f32 %v1082, %v1103
  %v1106 = vxor.u32 %v1105, 2147483648
  %v1107 = vmul.f32 %v1106, 1.442695
  %v1108 = vpow.pop %v1107
  %v1109 = vadd.f32 %v1108, 1.0
  %v1110 = vrcp.pop %v1109
  %v1111 = vmul.f32 %v1109, %v1110
  %v1112 = vsub.f32 1.0, %v1111
  %v1113 = vmul.f32 %v1110, %v1112
  %v1114 = vadd.f32 %v1110, %v1113
  %vm1115 = vweird.f32 %v1109
  %vm1116 = vweird.f32 %v1110
  %vm1117 = vmor %vm1115, %vm1116
  %v1118 = vsel %vm1117, %v1110, %v1114
  %v1119 = vand.u32 2147483647, %v1109
  %vm1120 = vcmp.eq.f32.partialorder %v1119, 8.507059e+37
  %v1121 = vand.u32 %v1109, 2147483648
  %v1122 = vor.u32 1.1754944e-38, %v1121
  %v1123 = vsel %vm1120, %v1122, %v1118
  %v1124 = vmul.f32 1.0, %v1123
  %v1125 = vtanh.pop %v1105
  %v1126 = vmul.f32 %v1124, %v1069
  %1128 = vrot.lane.b32.xlu0 %v1125, 64
  %v1129 = vpop.permute.xlu0 %1128
  %v1131 = vmul.f32 %v1124, %v1129
  %1133 = vrot.lane.b32.xlu0 %v1131, 32
  %v1134 = vpop.permute.xlu0 %1133
  %v1136 = vadd.f32 %v1126, %v1134
  %v1137 = vtanh.pop %v1136
  %1139 = vrot.lane.b32.xlu0 %v1137, 64
  %v1140 = vpop.permute.xlu0 %1139
  %v1142 = vmul.f32 %v1124, %v1140
  %1144 = vrot.lane.b32.xlu0 %v1142, 32
  %v1145 = vpop.permute.xlu0 %1144
  %s1147 = scalar_lea.vmem [#allocation4], 24
  %1148 = vst.msk [vmem:[%s1147] sm:$0xff] %vm202, %v1145
  %v1149 = vld [vmem:[%s527] sm:$0xff]
  %v1150 = vsel %vm202, %v1145, 0
  %1152 = vmatpush.msra.mxu0 0.0
  %1153 = vmatpush.msra.mxu0 0.0
  %1154 = vmatpush.msra.mxu0 0.0
  %1155 = vmatpush.msra.mxu0 0.0
  %1156 = vmatpush.msra.mxu0 0.0
  %1157 = vmatpush.msra.mxu0 0.0
  %1158 = vmatpush.msra.mxu0 0.0
  %1159 = vmatpush.msra.mxu0 0.0
  %1160 = vmatpush.msra.mxu0 0.0
  %1161 = vmatpush.msra.mxu0 0.0
  %1162 = vmatpush.msra.mxu0 0.0
  %1163 = vmatpush.msra.mxu0 0.0
  %1164 = vmatpush.msra.mxu0 %v883
  %1165 = vmatpush.msra.mxu0 %v882
  %1166 = vmatpush.msra.mxu0 %v881
  %1167 = vmatpush.msra.mxu0 %v880
  %1168 = vmatmul.f32.gmra.mxu0 %v1150
  %v1169 = vpop.f32.mrf.mxu0
  %v1170 = vadd.f32 0.0, %v1169
  %1171 = vdwg.mxu0
  %v1172 = vadd.f32 %v1149, %v1170
  %v1173 = vxor.u32 %v1172, 2147483648
  %v1174 = vmul.f32 %v1173, 1.442695
  %v1175 = vpow.pop %v1174
  %v1176 = vadd.f32 %v1175, 1.0
  %v1177 = vrcp.pop %v1176
  %v1178 = vmul.f32 %v1176, %v1177
  %v1179 = vsub.f32 1.0, %v1178
  %v1180 = vmul.f32 %v1177, %v1179
  %v1181 = vadd.f32 %v1177, %v1180
  %vm1182 = vweird.f32 %v1176
  %vm1183 = vweird.f32 %v1177
  %vm1184 = vmor %vm1182, %vm1183
  %v1185 = vsel %vm1184, %v1177, %v1181
  %v1186 = vand.u32 2147483647, %v1176
  %vm1187 = vcmp.eq.f32.partialorder %v1186, 8.507059e+37
  %v1188 = vand.u32 %v1176, 2147483648
  %v1189 = vor.u32 1.1754944e-38, %v1188
  %v1190 = vsel %vm1187, %v1189, %v1185
  %v1191 = vmul.f32 1.0, %v1190
  %v1192 = vtanh.pop %v1172
  %v1193 = vmul.f32 %v1191, %v1136
  %1195 = vrot.lane.b32.xlu0 %v1192, 64
  %v1196 = vpop.permute.xlu0 %1195
  %v1198 = vmul.f32 %v1191, %v1196
  %1200 = vrot.lane.b32.xlu0 %v1198, 32
  %v1201 = vpop.permute.xlu0 %1200
  %v1203 = vadd.f32 %v1193, %v1201
  %v1204 = vtanh.pop %v1203
  %1206 = vrot.lane.b32.xlu0 %v1204, 64
  %v1207 = vpop.permute.xlu0 %1206
  %v1209 = vmul.f32 %v1191, %v1207
  %1211 = vrot.lane.b32.xlu0 %v1209, 32
  %v1212 = vpop.permute.xlu0 %1211
  %s1214 = scalar_lea.vmem [#allocation4], 32
  %1215 = vst.msk [vmem:[%s1214] sm:$0xff] %vm202, %v1212
  %v1216 = vld [vmem:[%s595] sm:$0xff]
  %v1217 = vsel %vm202, %v1212, 0
  %1219 = vmatpush.msra.mxu0 0.0
  %1220 = vmatpush.msra.mxu0 0.0
  %1221 = vmatpush.msra.mxu0 0.0
  %1222 = vmatpush.msra.mxu0 0.0
  %1223 = vmatpush.msra.mxu0 0.0
  %1224 = vmatpush.msra.mxu0 0.0
  %1225 = vmatpush.msra.mxu0 0.0
  %1226 = vmatpush.msra.mxu0 0.0
  %1227 = vmatpush.msra.mxu0 0.0
  %1228 = vmatpush.msra.mxu0 0.0
  %1229 = vmatpush.msra.mxu0 0.0
  %1230 = vmatpush.msra.mxu0 0.0
  %1231 = vmatpush.msra.mxu0 %v883
  %1232 = vmatpush.msra.mxu0 %v882
  %1233 = vmatpush.msra.mxu0 %v881
  %1234 = vmatpush.msra.mxu0 %v880
  %1235 = vmatmul.f32.gmra.mxu0 %v1217
  %v1236 = vpop.f32.mrf.mxu0
  %v1237 = vadd.f32 0.0, %v1236
  %1238 = vdwg.mxu0
  %v1239 = vadd.f32 %v1216, %v1237
  %v1240 = vxor.u32 %v1239, 2147483648
  %v1241 = vmul.f32 %v1240, 1.442695
  %v1242 = vpow.pop %v1241
  %v1243 = vadd.f32 %v1242, 1.0
  %v1244 = vrcp.pop %v1243
  %v1245 = vmul.f32 %v1243, %v1244
  %v1246 = vsub.f32 1.0, %v1245
  %v1247 = vmul.f32 %v1244, %v1246
  %v1248 = vadd.f32 %v1244, %v1247
  %vm1249 = vweird.f32 %v1243
  %vm1250 = vweird.f32 %v1244
  %vm1251 = vmor %vm1249, %vm1250
  %v1252 = vsel %vm1251, %v1244, %v1248
  %v1253 = vand.u32 2147483647, %v1243
  %vm1254 = vcmp.eq.f32.partialorder %v1253, 8.507059e+37
  %v1255 = vand.u32 %v1243, 2147483648
  %v1256 = vor.u32 1.1754944e-38, %v1255
  %v1257 = vsel %vm1254, %v1256, %v1252
  %v1258 = vmul.f32 1.0, %v1257
  %v1259 = vtanh.pop %v1239
  %v1260 = vmul.f32 %v1258, %v1203
  %1262 = vrot.lane.b32.xlu0 %v1259, 64
  %v1263 = vpop.permute.xlu0 %1262
  %v1265 = vmul.f32 %v1258, %v1263
  %1267 = vrot.lane.b32.xlu0 %v1265, 32
  %v1268 = vpop.permute.xlu0 %1267
  %v1270 = vadd.f32 %v1260, %v1268
  %v1271 = vtanh.pop %v1270
  %1273 = vrot.lane.b32.xlu0 %v1271, 64
  %v1274 = vpop.permute.xlu0 %1273
  %v1276 = vmul.f32 %v1258, %v1274
  %1278 = vrot.lane.b32.xlu0 %v1276, 32
  %v1279 = vpop.permute.xlu0 %1278
  %s1281 = scalar_lea.vmem [#allocation4], 40
  %1282 = vst.msk [vmem:[%s1281] sm:$0xff] %vm202, %v1279
  %v1283 = vld [vmem:[%s663] sm:$0xff]
  %v1284 = vsel %vm202, %v1279, 0
  %1286 = vmatpush.msra.mxu0 0.0
  %1287 = vmatpush.msra.mxu0 0.0
  %1288 = vmatpush.msra.mxu0 0.0
  %1289 = vmatpush.msra.mxu0 0.0
  %1290 = vmatpush.msra.mxu0 0.0
  %1291 = vmatpush.msra.mxu0 0.0
  %1292 = vmatpush.msra.mxu0 0.0
  %1293 = vmatpush.msra.mxu0 0.0
  %1294 = vmatpush.msra.mxu0 0.0
  %1295 = vmatpush.msra.mxu0 0.0
  %1296 = vmatpush.msra.mxu0 0.0
  %1297 = vmatpush.msra.mxu0 0.0
  %1298 = vmatpush.msra.mxu0 %v883
  %1299 = vmatpush.msra.mxu0 %v882
  %1300 = vmatpush.msra.mxu0 %v881
  %1301 = vmatpush.msra.mxu0 %v880
  %1302 = vmatmul.f32.gmra.mxu0 %v1284
  %v1303 = vpop.f32.mrf.mxu0
  %v1304 = vadd.f32 0.0, %v1303
  %1305 = vdwg.mxu0
  %v1306 = vadd.f32 %v1283, %v1304
  %v1307 = vxor.u32 %v1306, 2147483648
  %v1308 = vmul.f32 %v1307, 1.442695
  %v1309 = vpow.pop %v1308
  %v1310 = vadd.f32 %v1309, 1.0
  %v1311 = vrcp.pop %v1310
  %v1312 = vmul.f32 %v1310, %v1311
  %v1313 = vsub.f32 1.0, %v1312
  %v1314 = vmul.f32 %v1311, %v1313
  %v1315 = vadd.f32 %v1311, %v1314
  %vm1316 = vweird.f32 %v1310
  %vm1317 = vweird.f32 %v1311
  %vm1318 = vmor %vm1316, %vm1317
  %v1319 = vsel %vm1318, %v1311, %v1315
  %v1320 = vand.u32 2147483647, %v1310
  %vm1321 = vcmp.eq.f32.partialorder %v1320, 8.507059e+37
  %v1322 = vand.u32 %v1310, 2147483648
  %v1323 = vor.u32 1.1754944e-38, %v1322
  %v1324 = vsel %vm1321, %v1323, %v1319
  %v1325 = vmul.f32 1.0, %v1324
  %v1326 = vtanh.pop %v1306
  %v1327 = vmul.f32 %v1325, %v1270
  %1329 = vrot.lane.b32.xlu0 %v1326, 64
  %v1330 = vpop.permute.xlu0 %1329
  %v1332 = vmul.f32 %v1325, %v1330
  %1334 = vrot.lane.b32.xlu0 %v1332, 32
  %v1335 = vpop.permute.xlu0 %1334
  %v1337 = vadd.f32 %v1327, %v1335
  %v1338 = vtanh.pop %v1337
  %1340 = vrot.lane.b32.xlu0 %v1338, 64
  %v1341 = vpop.permute.xlu0 %1340
  %v1343 = vmul.f32 %v1325, %v1341
  %1345 = vrot.lane.b32.xlu0 %v1343, 32
  %v1346 = vpop.permute.xlu0 %1345
  %s1348 = scalar_lea.vmem [#allocation4], 48
  %1349 = vst.msk [vmem:[%s1348] sm:$0xff] %vm202, %v1346
  %v1350 = vld [vmem:[%s731] sm:$0xff]
  %v1351 = vsel %vm202, %v1346, 0
  %1353 = vmatpush.msra.mxu0 0.0
  %1354 = vmatpush.msra.mxu0 0.0
  %1355 = vmatpush.msra.mxu0 0.0
  %1356 = vmatpush.msra.mxu0 0.0
  %1357 = vmatpush.msra.mxu0 0.0
  %1358 = vmatpush.msra.mxu0 0.0
  %1359 = vmatpush.msra.mxu0 0.0
  %1360 = vmatpush.msra.mxu0 0.0
  %1361 = vmatpush.msra.mxu0 0.0
  %1362 = vmatpush.msra.mxu0 0.0
  %1363 = vmatpush.msra.mxu0 0.0
  %1364 = vmatpush.msra.mxu0 0.0
  %1365 = vmatpush.msra.mxu0 %v883
  %1366 = vmatpush.msra.mxu0 %v882
  %1367 = vmatpush.msra.mxu0 %v881
  %1368 = vmatpush.msra.mxu0 %v880
  %1369 = vmatmul.f32.gmra.mxu0 %v1351
  %v1370 = vpop.f32.mrf.mxu0
  %v1371 = vadd.f32 0.0, %v1370
  %1372 = vdwg.mxu0
  %v1373 = vadd.f32 %v1350, %v1371
  %v1374 = vxor.u32 %v1373, 2147483648
  %v1375 = vmul.f32 %v1374, 1.442695
  %v1376 = vpow.pop %v1375
  %v1377 = vadd.f32 %v1376, 1.0
  %v1378 = vrcp.pop %v1377
  %v1379 = vmul.f32 %v1377, %v1378
  %v1380 = vsub.f32 1.0, %v1379
  %v1381 = vmul.f32 %v1378, %v1380
  %v1382 = vadd.f32 %v1378, %v1381
  %vm1383 = vweird.f32 %v1377
  %vm1384 = vweird.f32 %v1378
  %vm1385 = vmor %vm1383, %vm1384
  %v1386 = vsel %vm1385, %v1378, %v1382
  %v1387 = vand.u32 2147483647, %v1377
  %vm1388 = vcmp.eq.f32.partialorder %v1387, 8.507059e+37
  %v1389 = vand.u32 %v1377, 2147483648
  %v1390 = vor.u32 1.1754944e-38, %v1389
  %v1391 = vsel %vm1388, %v1390, %v1386
  %v1392 = vmul.f32 1.0, %v1391
  %v1393 = vtanh.pop %v1373
  %v1394 = vmul.f32 %v1392, %v1337
  %1396 = vrot.lane.b32.xlu0 %v1393, 64
  %v1397 = vpop.permute.xlu0 %1396
  %v1399 = vmul.f32 %v1392, %v1397
  %1401 = vrot.lane.b32.xlu0 %v1399, 32
  %v1402 = vpop.permute.xlu0 %1401
  %v1404 = vadd.f32 %v1394, %v1402
  %v1405 = vtanh.pop %v1404
  %1407 = vrot.lane.b32.xlu0 %v1405, 64
  %v1408 = vpop.permute.xlu0 %1407
  %v1410 = vmul.f32 %v1392, %v1408
  %1412 = vrot.lane.b32.xlu0 %v1410, 32
  %v1413 = vpop.permute.xlu0 %1412
  %s1415 = scalar_lea.vmem [#allocation4], 56
  %1416 = vst.msk [vmem:[%s1415] sm:$0xff] %vm202, %v1413
  %v1417 = vld [vmem:[#allocation4] sm:$0xff]
  %v1418 = vld [vmem:[#allocation4 + $0x8] sm:$0xff]
  %v1419 = vld [vmem:[#allocation4 + $0x10] sm:$0xff]
  %v1420 = vld [vmem:[#allocation4 + $0x18] sm:$0xff]
  %v1421 = vld [vmem:[#allocation4 + $0x20] sm:$0xff]
  %v1422 = vld [vmem:[#allocation4 + $0x28] sm:$0xff]
  %v1423 = vld [vmem:[#allocation4 + $0x30] sm:$0xff]
  %v1424 = vld [vmem:[#allocation4 + $0x38] sm:$0xff]
  %v1425 = vpack.c.bf16 %v1418, %v1417
  %v1426 = vpack.c.bf16 %v1420, %v1419
  %v1427 = vpack.c.bf16 %v1422, %v1421
  %v1428 = vpack.c.bf16 %v1424, %v1423
  %v1429 = vld [vmem:[%s8] sm:$0xf]
  %v1430 = vld [vmem:[%s8 + $0x4] sm:$0xf]
  %v1431 = vld [vmem:[%s8 + $0x8] sm:$0xf]
  %v1432 = vld [vmem:[%s8 + $0xc] sm:$0xf]
  %v1433 = vld [vmem:[%s9] sm:$0x1]
  %v1435 = vperm.slane %v1433, 0
  %v1441 = vunpack.c.l.b16 %v1429
  %v1442 = vunpack.c.l.b16 %v1430
  %v1443 = vunpack.c.l.b16 %v1431
  %v1444 = vunpack.c.l.b16 %v1432
  %v1445 = vpack.c.b16 %v1442, %v1441
  %v1446 = vpack.c.b16 %v1444, %v1443
  %v1450 = vsel %vm202, %v1425, 0
  %v1453 = vsel %vm202, %v1426, 0
  %v1456 = vsel %vm202, %v1427, 0
  %v1459 = vsel %vm202, %v1428, 0
  %1461 = vmatpush.bf16.msra.mxu0 0
  %1462 = vmatpush.bf16.msra.mxu0 0
  %1463 = vmatpush.bf16.msra.mxu0 0
  %1464 = vmatpush.bf16.msra.mxu0 0
  %1465 = vmatpush.bf16.msra.mxu0 0
  %1466 = vmatpush.bf16.msra.mxu0 0
  %1467 = vmatpush.bf16.msra.mxu0 %v1446
  %1468 = vmatpush.bf16.msra.mxu0 %v1445
  %1469 = vmatmul.bf16.gmra.mxu0 %v1450
  %v1470 = vpop.f32.mrf.mxu0
  %v1471 = vadd.f32 %v1435, %v1470
  %v1472 = vpop.f32.mrf.mxu0
  %v1473 = vadd.f32 %v1435, %v1472
  %1474 = vmatmul.bf16.gmra.mxu0 %v1453
  %v1475 = vpop.f32.mrf.mxu0
  %v1476 = vadd.f32 %v1435, %v1475
  %v1477 = vpop.f32.mrf.mxu0
  %v1478 = vadd.f32 %v1435, %v1477
  %1479 = vmatmul.bf16.gmra.mxu0 %v1456
  %v1480 = vpop.f32.mrf.mxu0
  %v1481 = vadd.f32 %v1435, %v1480
  %v1482 = vpop.f32.mrf.mxu0
  %v1483 = vadd.f32 %v1435, %v1482
  %1484 = vmatmul.bf16.gmra.mxu0 %v1459
  %v1485 = vpop.f32.mrf.mxu0
  %v1486 = vadd.f32 %v1435, %v1485
  %v1487 = vpop.f32.mrf.mxu0
  %v1488 = vadd.f32 %v1435, %v1487
  %1489 = vdwg.mxu0
  %v1490 = vmax.f32 %v1471, 0.0
  %v1491 = vmax.f32 %v1473, 0.0
  %v1492 = vmax.f32 %v1476, 0.0
  %v1493 = vmax.f32 %v1478, 0.0
  %v1494 = vmax.f32 %v1481, 0.0
  %v1495 = vmax.f32 %v1483, 0.0
  %v1496 = vmax.f32 %v1486, 0.0
  %v1497 = vmax.f32 %v1488, 0.0
  %v1498 = vpack.c.bf16 %v1491, %v1490
  %v1499 = vpack.c.bf16 %v1493, %v1492
  %v1500 = vpack.c.bf16 %v1495, %v1494
  %v1501 = vpack.c.bf16 %v1497, %v1496
  %v1502 = vld [vmem:[%s10] sm:$0xf]
  %v1503 = vld [vmem:[%s10 + $0x4] sm:$0xf]
  %v1504 = vld [vmem:[%s10 + $0x8] sm:$0xf]
  %v1505 = vld [vmem:[%s10 + $0xc] sm:$0xf]
  %v1506 = vld [vmem:[%s11] sm:$0x1]
  %v1508 = vperm.slane %v1506, 0
  %v1514 = vunpack.c.l.b16 %v1502
  %v1515 = vunpack.c.l.b16 %v1503
  %v1516 = vunpack.c.l.b16 %v1504
  %v1517 = vunpack.c.l.b16 %v1505
  %v1518 = vpack.c.b16 %v1515, %v1514
  %v1519 = vpack.c.b16 %v1517, %v1516
  %v1523 = vsel %vm202, %v1498, 0
  %v1526 = vsel %vm202, %v1499, 0
  %v1529 = vsel %vm202, %v1500, 0
  %v1532 = vsel %vm202, %v1501, 0
  %1534 = vmatpush.bf16.msra.mxu0 0
  %1535 = vmatpush.bf16.msra.mxu0 0
  %1536 = vmatpush.bf16.msra.mxu0 0
  %1537 = vmatpush.bf16.msra.mxu0 0
  %1538 = vmatpush.bf16.msra.mxu0 0
  %1539 = vmatpush.bf16.msra.mxu0 0
  %1540 = vmatpush.bf16.msra.mxu0 %v1519
  %1541 = vmatpush.bf16.msra.mxu0 %v1518
  %1542 = vmatmul.bf16.gmra.mxu0 %v1523
  %v1543 = vpop.f32.mrf.mxu0
  %v1544 = vadd.f32 %v1508, %v1543
  %v1545 = vpop.f32.mrf.mxu0
  %v1546 = vadd.f32 %v1508, %v1545
  %1547 = vmatmul.bf16.gmra.mxu0 %v1526
  %v1548 = vpop.f32.mrf.mxu0
  %v1549 = vadd.f32 %v1508, %v1548
  %v1550 = vpop.f32.mrf.mxu0
  %v1551 = vadd.f32 %v1508, %v1550
  %1552 = vmatmul.bf16.gmra.mxu0 %v1529
  %v1553 = vpop.f32.mrf.mxu0
  %v1554 = vadd.f32 %v1508, %v1553
  %v1555 = vpop.f32.mrf.mxu0
  %v1556 = vadd.f32 %v1508, %v1555
  %1557 = vmatmul.bf16.gmra.mxu0 %v1532
  %v1558 = vpop.f32.mrf.mxu0
  %v1559 = vadd.f32 %v1508, %v1558
  %v1560 = vpop.f32.mrf.mxu0
  %v1561 = vadd.f32 %v1508, %v1560
  %1562 = vdwg.mxu0
  %1563 = vmax.xlane.f32.xlu0 %v1544
  %v1564 = vpop.xlane.xlu0 %1563
  %1565 = vmax.xlane.f32.xlu0 %v1546
  %v1566 = vpop.xlane.xlu0 %1565
  %1567 = vmax.xlane.f32.xlu0 %v1549
  %v1568 = vpop.xlane.xlu0 %1567
  %1569 = vmax.xlane.f32.xlu0 %v1551
  %v1570 = vpop.xlane.xlu0 %1569
  %1571 = vmax.xlane.f32.xlu0 %v1554
  %v1572 = vpop.xlane.xlu0 %1571
  %1573 = vmax.xlane.f32.xlu0 %v1556
  %v1574 = vpop.xlane.xlu0 %1573
  %1575 = vmax.xlane.f32.xlu0 %v1559
  %v1576 = vpop.xlane.xlu0 %1575
  %1577 = vmax.xlane.f32.xlu0 %v1561
  %v1578 = vpop.xlane.xlu0 %1577
  %v1579 = vsub.f32 %v1544, %v1564
  %v1580 = vsub.f32 %v1546, %v1566
  %v1581 = vsub.f32 %v1549, %v1568
  %v1582 = vsub.f32 %v1551, %v1570
  %v1583 = vsub.f32 %v1554, %v1572
  %v1584 = vsub.f32 %v1556, %v1574
  %v1585 = vsub.f32 %v1559, %v1576
  %v1586 = vsub.f32 %v1561, %v1578
  %v1587 = vmul.f32 %v1579, 1.442695
  %v1588 = vpow.pop %v1587
  %v1589 = vmul.f32 %v1580, 1.442695
  %v1590 = vpow.pop %v1589
  %v1591 = vmul.f32 %v1581, 1.442695
  %v1592 = vpow.pop %v1591
  %v1593 = vmul.f32 %v1582, 1.442695
  %v1594 = vpow.pop %v1593
  %v1595 = vmul.f32 %v1583, 1.442695
  %v1596 = vpow.pop %v1595
  %v1597 = vmul.f32 %v1584, 1.442695
  %v1598 = vpow.pop %v1597
  %v1599 = vmul.f32 %v1585, 1.442695
  %v1600 = vpow.pop %v1599
  %v1601 = vmul.f32 %v1586, 1.442695
  %v1602 = vpow.pop %v1601
  %1603 = vadd.xlane.f32.xlu0 %v1588
  %v1604 = vpop.xlane.xlu0 %1603
  %1605 = vadd.xlane.f32.xlu0 %v1590
  %v1606 = vpop.xlane.xlu0 %1605
  %1607 = vadd.xlane.f32.xlu0 %v1592
  %v1608 = vpop.xlane.xlu0 %1607
  %1609 = vadd.xlane.f32.xlu0 %v1594
  %v1610 = vpop.xlane.xlu0 %1609
  %1611 = vadd.xlane.f32.xlu0 %v1596
  %v1612 = vpop.xlane.xlu0 %1611
  %1613 = vadd.xlane.f32.xlu0 %v1598
  %v1614 = vpop.xlane.xlu0 %1613
  %1615 = vadd.xlane.f32.xlu0 %v1600
  %v1616 = vpop.xlane.xlu0 %1615
  %1617 = vadd.xlane.f32.xlu0 %v1602
  %v1618 = vpop.xlane.xlu0 %1617
  %v1619 = vlog2.pop %v1604
  %v1620 = vmul.f32 %v1619, 0.6931472
  %v1621 = vlog2.pop %v1606
  %v1622 = vmul.f32 %v1621, 0.6931472
  %v1623 = vlog2.pop %v1608
  %v1624 = vmul.f32 %v1623, 0.6931472
  %v1625 = vlog2.pop %v1610
  %v1626 = vmul.f32 %v1625, 0.6931472
  %v1627 = vlog2.pop %v1612
  %v1628 = vmul.f32 %v1627, 0.6931472
  %v1629 = vlog2.pop %v1614
  %v1630 = vmul.f32 %v1629, 0.6931472
  %v1631 = vlog2.pop %v1616
  %v1632 = vmul.f32 %v1631, 0.6931472
  %v1633 = vlog2.pop %v1618
  %v1634 = vmul.f32 %v1633, 0.6931472
  %v1635 = vadd.f32 %v1564, %v1620
  %v1636 = vadd.f32 %v1566, %v1622
  %v1637 = vadd.f32 %v1568, %v1624
  %v1638 = vadd.f32 %v1570, %v1626
  %v1639 = vadd.f32 %v1572, %v1628
  %v1640 = vadd.f32 %v1574, %v1630
  %v1641 = vadd.f32 %v1576, %v1632
  %v1642 = vadd.f32 %v1578, %v1634
  %v1643 = vsub.f32 %v1544, %v1635
  %v1644 = vsub.f32 %v1546, %v1636
  %v1645 = vsub.f32 %v1549, %v1637
  %v1646 = vsub.f32 %v1551, %v1638
  %v1647 = vsub.f32 %v1554, %v1639
  %v1648 = vsub.f32 %v1556, %v1640
  %v1649 = vsub.f32 %v1559, %v1641
  %v1650 = vsub.f32 %v1561, %v1642
  %1651 = vst [vmem:[%s12] sm:$0xff] %v1643
  %1652 = vst [vmem:[%s12 + $0x8] sm:$0xff] %v1644
  %1653 = vst [vmem:[%s12 + $0x10] sm:$0xff] %v1645
  %1654 = vst [vmem:[%s12 + $0x18] sm:$0xff] %v1646
  %1655 = vst [vmem:[%s12 + $0x20] sm:$0xff] %v1647
  %1656 = vst [vmem:[%s12 + $0x28] sm:$0xff] %v1648
  %1657 = vst [vmem:[%s12 + $0x30] sm:$0xff] %v1649
  %1658 = vst [vmem:[%s12 + $0x38] sm:$0xff] %v1650
  // Predicated region
  $region50: #{lstm_model_forward.1} parent=0 // pred_check
    _
  $region51: #{lstm_model_forward.1} parent=0 // pred_check_branch
    %1660 = sbr.rel (0) target = $region53
  $region52: #{lstm_model_forward.1} parent=0 // pred_region
    _
  $region53: #{lstm_model_forward.1} parent=0 // pred_fallthru
    _
  // Predicated region
  $region54: #{lstm_model_forward.1} parent=0 // pred_check
    _
  $region55: #{lstm_model_forward.1} parent=0 // pred_check_branch
    %1662 = sbr.rel (0) target = $region57
  $region56: #{lstm_model_forward.1} parent=0 // pred_region
    _
  $region57: #{lstm_model_forward.1} parent=0 // pred_fallthru
    _

</llo_original>
